<compile_context>
chip_gen: v7x
topology: tpu7x:2x2x1
jax: 0.10.0
libtpu: 0.0.40
codegen_flags: <defaults>
</compile_context>

<pallas_src>
import functools

import jax
import jax.numpy as jnp
from jax.experimental import pallas as pl
from jax.experimental.pallas import tpu as pltpu


def _pick_q_tile(L):
  """Largest query tile that divides L and respects the (8,128) rule."""
  for t in (256, 128, 64, 32, 16, 8):
    if L % t == 0:
      return t
  return L  # fall back to the full sequence (block == full dim is allowed)


# ----------------------------------------------------------------------------
# Pallas kernel: one transformer encoder layer, grid = (batch, query tile).
# ----------------------------------------------------------------------------
def encoder_layer_kernel(
    x_ref, kbias_ref,
    wqkv_ref, bqkv_ref, wo_ref, bo_ref, ln1g_ref, ln1b_ref,
    w1_ref, b1_ref, w2_ref, b2_ref, ln2g_ref, ln2b_ref,
    o_ref,
    q_sc, k_sc, v_sc,
    *, n_heads, q_tile):
  _, L, dh = q_sc.shape
  D = n_heads * dh
  scale = float(dh) ** -0.5
  qi = pl.program_id(1)

  # ---- fused QKV projection over the full sequence, once per batch element.
  # Head split into head-major (H, L, dh) scratch is done here (amortized over
  # all query tiles of this batch element) so the per-tile attention below is
  # purely batched einsums.
  @pl.when(qi == 0)
  def _():
    x_full = x_ref[0].astype(jnp.bfloat16)                        # (L, D)
    qkv = (jnp.dot(x_full, wqkv_ref[...],
                   preferred_element_type=jnp.float32)
           + bqkv_ref[...])                                       # (L, 3D) f32
    # Slab-wise scale + cast (single VPU pass per slab), then static per-head
    # stores into head-major scratch.
    q_all = (qkv[:, :D] * scale).astype(jnp.bfloat16)             # pre-scaled Q
    k_all = qkv[:, D:2 * D].astype(jnp.bfloat16)
    v_all = qkv[:, 2 * D:].astype(jnp.bfloat16)
    for h in range(n_heads):                                      # static loop
      lo = h * dh
      q_sc[h] = q_all[:, lo:lo + dh]
      k_sc[h] = k_all[:, lo:lo + dh]
      v_sc[h] = v_all[:, lo:lo + dh]

  q0 = pl.multiple_of(qi * q_tile, q_tile)

  # ---- batched multi-head attention for this query tile ---------------------
  qh = q_sc[:, pl.ds(q0, q_tile), :]                              # (H, tq, dh)
  kh = k_sc[...]                                                  # (H, L,  dh)
  vh = v_sc[...]                                                  # (H, L,  dh)

  s = jnp.einsum('hqd,hkd->hqk', qh, kh,
                 preferred_element_type=jnp.float32)              # (H, tq, L)
  s = s + kbias_ref[0]                 # (1, L) key-validity bias, broadcast
  s = s - jnp.max(s, axis=-1, keepdims=True)
  p = jnp.exp(s)                                                  # f32 softmax
  p = p * pl.reciprocal(jnp.sum(p, axis=-1, keepdims=True), approx=True)

  ctx = jnp.einsum('hqk,hkd->hqd', p.astype(jnp.bfloat16), vh,
                   preferred_element_type=jnp.float32)            # (H, tq, dh)
  # Output projection with head-major weight (H, dh, D); summing over heads is
  # equivalent to concat(ctx_h) @ Wo and avoids any transpose / concat.
  attn = jnp.einsum('hqd,hde->hqe', ctx.astype(jnp.bfloat16), wo_ref[...],
                    preferred_element_type=jnp.float32)           # (H, tq, D)
  attn = jnp.sum(attn, axis=0) + bo_ref[...]                      # (tq, D)

  # ---- residual + LayerNorm 1 (f32) -----------------------------------------
  x_tile = x_ref[0, pl.ds(q0, q_tile), :]                         # (tq, D) f32
  h1 = x_tile + attn                    # dropout == identity (eval mode)
  mu = jnp.mean(h1, axis=-1, keepdims=True)
  var = jnp.mean((h1 - mu) ** 2, axis=-1, keepdims=True)
  h1 = (h1 - mu) * jax.lax.rsqrt(var + 1e-5) * ln1g_ref[...] + ln1b_ref[...]

  # ---- position-wise feed-forward (GELU, tanh form as in BERT), bf16 matmuls -
  f = (jnp.dot(h1.astype(jnp.bfloat16), w1_ref[...],
               preferred_element_type=jnp.float32) + b1_ref[...])
  # TODO(synk): tanh-approx GELU (matches the standard BERT GELU); nn.GELU's
  # default exact-erf form differs by <1e-3 relative.
  f = 0.5 * f * (1.0 + jnp.tanh(0.7978845608028654 * (f + 0.044715 * f * f * f)))
  f = (jnp.dot(f.astype(jnp.bfloat16), w2_ref[...],
               preferred_element_type=jnp.float32) + b2_ref[...])

  # ---- residual + LayerNorm 2 -----------------------------------------------
  h2 = h1 + f
  mu2 = jnp.mean(h2, axis=-1, keepdims=True)
  var2 = jnp.mean((h2 - mu2) ** 2, axis=-1, keepdims=True)
  h2 = (h2 - mu2) * jax.lax.rsqrt(var2 + 1e-5) * ln2g_ref[...] + ln2b_ref[...]

  o_ref[0] = h2.astype(o_ref.dtype)


def encoder_layer(x, kbias, lp, n_heads):
  """One encoder layer. x: (B, L, D) f32, kbias: (B, 1, L) f32 additive mask."""
  B, L, D = x.shape
  Dff = lp["w1"].shape[1]
  dh = D // n_heads
  tq = _pick_q_tile(L)
  nq = L // tq

  def rep(shape):  # grid-invariant (weight) block: fetched once, kept resident
    z = (0,) * len(shape)
    return pl.BlockSpec(shape, lambda b, q, z=z: z)

  in_specs = [
      pl.BlockSpec((1, L, D), lambda b, q: (b, 0, 0)),     # x: full seq / batch
      pl.BlockSpec((1, 1, L), lambda b, q: (b, 0, 0)),     # key-validity bias
      rep((D, 3 * D)), rep((1, 3 * D)),                    # fused wqkv, bqkv
      rep((n_heads, dh, D)), rep((1, D)),                  # wo (head-major), bo
      rep((1, D)), rep((1, D)),                            # ln1 gamma, beta
      rep((D, Dff)), rep((1, Dff)),                        # w1, b1
      rep((Dff, D)), rep((1, D)),                          # w2, b2
      rep((1, D)), rep((1, D)),                            # ln2 gamma, beta
  ]

  flops = int(2 * B * L * D * 3 * D           # fused QKV
              + 4 * B * n_heads * L * L * dh  # QK^T + PV
              + 2 * B * L * D * D             # output projection
              + 4 * B * L * D * Dff)          # FFN
  transcendentals = int(B * n_heads * L * L + B * L * Dff)
  bytes_accessed = int(4 * (2 * B * L * D + B * L)
                       + 2 * (3 * D * D + D * D + 2 * D * Dff))

  kernel = functools.partial(encoder_layer_kernel, n_heads=n_heads, q_tile=tq)
  return pl.pallas_call(
      kernel,
      out_shape=jax.ShapeDtypeStruct((B, L, D), jnp.float32),
      grid=(B, nq),
      in_specs=in_specs,
      out_specs=pl.BlockSpec((1, tq, D), lambda b, q: (b, q, 0)),
      scratch_shapes=[pltpu.VMEM((n_heads, L, dh), jnp.bfloat16)] * 3,
      compiler_params=pltpu.CompilerParams(
          dimension_semantics=("parallel", "arbitrary"),
          vmem_limit_bytes=64 * 1024 * 1024),
      cost_estimate=pl.CostEstimate(flops=flops,
                                    transcendentals=transcendentals,
                                    bytes_accessed=bytes_accessed),
  )(x, kbias,
    lp["wqkv"], lp["bqkv"], lp["wo"], lp["bo"], lp["ln1g"], lp["ln1b"],
    lp["w1"], lp["b1"], lp["w2"], lp["b2"], lp["ln2g"], lp["ln2b"])


# ----------------------------------------------------------------------------
# Full BERT forward (glue + per-layer Pallas kernel).
# ----------------------------------------------------------------------------
def bert_forward(x_ids, seg_ids, params, n_heads):
  B, L = x_ids.shape
  # key-validity additive bias (0 for real tokens, -1e9 for padding); the
  # (L, L) broadcast happens inside the kernel, never in HBM.
  kbias = jnp.where(x_ids > 0, 0.0, -1e9).astype(jnp.float32)[:, None, :]

  # embedding: token (padding_idx=0) + position + segment (padding_idx=0)
  h = (params["tok_emb"][x_ids]
       + params["pos_emb"][jnp.arange(L)][None, :, :]
       + params["seg_emb"][seg_ids]).astype(jnp.float32)
  # embedding dropout == identity (eval mode)

  for lp in params["layers"]:
    h = encoder_layer(h, kbias, lp, n_heads)
  return h


def init_params(key, vocab_size, d_in, n_layers, n_heads, max_len):
  d_ff = 4 * d_in
  dh = d_in // n_heads
  keys = jax.random.split(key, 3 + n_layers)

  def rnd(k, shape):
    return (0.02 * jax.random.normal(k, shape)).astype(jnp.float32)

  tok = rnd(keys[0], (vocab_size, d_in)).at[0].set(0.0)    # padding_idx=0
  pos = rnd(keys[1], (max_len, d_in))
  seg = rnd(keys[2], (3, d_in)).at[0].set(0.0)             # padding_idx=0

  layers = []
  for li in range(n_layers):
    lk = jax.random.split(keys[3 + li], 6)
    wq, wk, wv, wo = (rnd(lk[i], (d_in, d_in)) for i in range(4))
    w1, w2 = rnd(lk[4], (d_in, d_ff)), rnd(lk[5], (d_ff, d_in))
    layers.append(dict(
        # fused QKV weight, bf16 for the MXU (packed once, outside the kernel)
        wqkv=jnp.concatenate([wq, wk, wv], axis=1).astype(jnp.bfloat16),
        bqkv=jnp.zeros((1, 3 * d_in), jnp.float32),
        # output projection reshaped head-major: (H, dh, D)
        wo=wo.reshape(n_heads, dh, d_in).astype(jnp.bfloat16),
        bo=jnp.zeros((1, d_in), jnp.float32),
        ln1g=jnp.ones((1, d_in), jnp.float32),
        ln1b=jnp.zeros((1, d_in), jnp.float32),
        w1=w1.astype(jnp.bfloat16), b1=jnp.zeros((1, d_ff), jnp.float32),
        w2=w2.astype(jnp.bfloat16), b2=jnp.zeros((1, d_in), jnp.float32),
        ln2g=jnp.ones((1, d_in), jnp.float32),
        ln2b=jnp.zeros((1, d_in), jnp.float32),
    ))
  return dict(tok_emb=tok, pos_emb=pos, seg_emb=seg, layers=layers)


if __name__ == "__main__":
  # small shapes consistent with the module
  VOCAB, B, L, D, H, N_LAYERS = 16, 2, 8, 32, 4, 2

  key = jax.random.PRNGKey(0)
  pkey, xkey, skey = jax.random.split(key, 3)
  params = init_params(pkey, VOCAB, D, N_LAYERS, H, max_len=L)

  x_ids = jax.random.randint(xkey, (B, L), 1, VOCAB, dtype=jnp.int32)
  x_ids = x_ids.at[0, -2:].set(0)                 # some padding tokens
  seg_ids = jax.random.randint(skey, (B, L), 1, 3, dtype=jnp.int32)
  seg_ids = jnp.where(x_ids > 0, seg_ids, 0)

  out = bert_forward(x_ids, seg_ids, params, n_heads=H)
  out = jax.block_until_ready(out)
  assert out.shape == (B, L, D) and jnp.all(jnp.isfinite(out))
  print("KERNEL_OK")
</pallas_src>

<mosaic_0001>
module attributes {stable_mosaic.version = 11 : i64} {
  func.func @encoder_layer_kernel(%arg0: i32, %arg1: i32, %arg2: memref<1x8x32xf32, #tpu.memory_space<vmem>>, %arg3: memref<1x1x8xf32, #tpu.memory_space<vmem>>, %arg4: memref<32x96xbf16, #tpu.memory_space<vmem>>, %arg5: memref<1x96xf32, #tpu.memory_space<vmem>>, %arg6: memref<4x8x32xbf16, #tpu.memory_space<vmem>>, %arg7: memref<1x32xf32, #tpu.memory_space<vmem>>, %arg8: memref<1x32xf32, #tpu.memory_space<vmem>>, %arg9: memref<1x32xf32, #tpu.memory_space<vmem>>, %arg10: memref<32x128xbf16, #tpu.memory_space<vmem>>, %arg11: memref<1x128xf32, #tpu.memory_space<vmem>>, %arg12: memref<128x32xbf16, #tpu.memory_space<vmem>>, %arg13: memref<1x32xf32, #tpu.memory_space<vmem>>, %arg14: memref<1x32xf32, #tpu.memory_space<vmem>>, %arg15: memref<1x32xf32, #tpu.memory_space<vmem>>, %arg16: memref<1x8x32xf32, #tpu.memory_space<vmem>>, %arg17: memref<4x8x8xbf16, #tpu.memory_space<vmem>>, %arg18: memref<4x8x8xbf16, #tpu.memory_space<vmem>>, %arg19: memref<4x8x8xbf16, #tpu.memory_space<vmem>>) attributes {dimension_semantics = [#tpu.dimension_semantics<parallel>, #tpu.dimension_semantics<arbitrary>], iteration_bounds = array<i64: 2, 1>, scalar_prefetch = 0 : i64, scratch_operands = 3 : i64, tpu.core_type = #tpu.core_type<tc>, window_params = [{transform_indices = @transform_0, window_bounds = array<i64: 1, 8, 32>}, {transform_indices = @transform_1, window_bounds = array<i64: 1, 1, 8>}, {pipeline_mode = #tpu.pipeline_mode<synchronous>, transform_indices = @transform_2, window_bounds = array<i64: 32, 96>}, {pipeline_mode = #tpu.pipeline_mode<synchronous>, transform_indices = @transform_3, window_bounds = array<i64: 1, 96>}, {pipeline_mode = #tpu.pipeline_mode<synchronous>, transform_indices = @transform_4, window_bounds = array<i64: 4, 8, 32>}, {pipeline_mode = #tpu.pipeline_mode<synchronous>, transform_indices = @transform_5, window_bounds = array<i64: 1, 32>}, {pipeline_mode = #tpu.pipeline_mode<synchronous>, transform_indices = @transform_6, window_bounds = array<i64: 1, 32>}, {pipeline_mode = #tpu.pipeline_mode<synchronous>, transform_indices = @transform_7, window_bounds = array<i64: 1, 32>}, {pipeline_mode = #tpu.pipeline_mode<synchronous>, transform_indices = @transform_8, window_bounds = array<i64: 32, 128>}, {pipeline_mode = #tpu.pipeline_mode<synchronous>, transform_indices = @transform_9, window_bounds = array<i64: 1, 128>}, {pipeline_mode = #tpu.pipeline_mode<synchronous>, transform_indices = @transform_10, window_bounds = array<i64: 128, 32>}, {pipeline_mode = #tpu.pipeline_mode<synchronous>, transform_indices = @transform_11, window_bounds = array<i64: 1, 32>}, {pipeline_mode = #tpu.pipeline_mode<synchronous>, transform_indices = @transform_12, window_bounds = array<i64: 1, 32>}, {pipeline_mode = #tpu.pipeline_mode<synchronous>, transform_indices = @transform_13, window_bounds = array<i64: 1, 32>}, {transform_indices = @transform_14, window_bounds = array<i64: 1, 8, 32>}]} {
    %c0_i32 = arith.constant 0 : i32
    %0 = arith.cmpi eq, %arg1, %c0_i32 : i32
    %1 = arith.extui %0 : i1 to i32
    %c0_i32_0 = arith.constant 0 : i32
    %2 = arith.cmpi ne, %1, %c0_i32_0 : i32
    scf.if %2 {
      %c0_58 = arith.constant 0 : index
      %c0_59 = arith.constant 0 : index
      %c0_60 = arith.constant 0 : index
      %115 = vector.load %arg2[%c0_58, %c0_59, %c0_60] : memref<1x8x32xf32, #tpu.memory_space<vmem>>, vector<1x8x32xf32>
      %116 = vector.shape_cast %115 : vector<1x8x32xf32> to vector<8x32xf32>
      %117 = arith.truncf %116 : vector<8x32xf32> to vector<8x32xbf16>
      %c0_61 = arith.constant 0 : index
      %c0_62 = arith.constant 0 : index
      %118 = vector.load %arg4[%c0_61, %c0_62] : memref<32x96xbf16, #tpu.memory_space<vmem>>, vector<32x96xbf16>
      %cst_63 = arith.constant dense<0.000000e+00> : vector<8x96xf32>
      %119 = tpu.matmul %117, %118, %cst_63 {dimension_numbers = #tpu.dot_dimension_numbers<[1], [0], [0], [1], [0, 0, 1, 1], [], []>} : vector<8x32xbf16>, vector<32x96xbf16>, vector<8x96xf32> -> vector<8x96xf32>
      %c0_64 = arith.constant 0 : index
      %c0_65 = arith.constant 0 : index
      %120 = vector.load %arg5[%c0_64, %c0_65] : memref<1x96xf32, #tpu.memory_space<vmem>>, vector<1x96xf32>
      %121 = vector.broadcast %120 : vector<1x96xf32> to vector<8x96xf32>
      %122 = arith.addf %119, %121 : vector<8x96xf32>
      %123 = vector.extract_strided_slice %122 {offsets = [0, 0], sizes = [8, 32], strides = [1, 1]} : vector<8x96xf32> to vector<8x32xf32>
      %cst_66 = arith.constant 0.353553385 : f32
      %124 = vector.broadcast %cst_66 : f32 to vector<8x32xf32>
      %125 = arith.mulf %123, %124 : vector<8x32xf32>
      %126 = arith.truncf %125 : vector<8x32xf32> to vector<8x32xbf16>
      %127 = vector.extract_strided_slice %122 {offsets = [0, 32], sizes = [8, 32], strides = [1, 1]} : vector<8x96xf32> to vector<8x32xf32>
      %128 = arith.truncf %127 : vector<8x32xf32> to vector<8x32xbf16>
      %129 = vector.extract_strided_slice %122 {offsets = [0, 64], sizes = [8, 32], strides = [1, 1]} : vector<8x96xf32> to vector<8x32xf32>
      %130 = arith.truncf %129 : vector<8x32xf32> to vector<8x32xbf16>
      %131 = vector.extract_strided_slice %126 {offsets = [0, 0], sizes = [8, 8], strides = [1, 1]} : vector<8x32xbf16> to vector<8x8xbf16>
      %c0_67 = arith.constant 0 : index
      %c0_68 = arith.constant 0 : index
      %c0_69 = arith.constant 0 : index
      %132 = vector.load %arg17[%c0_67, %c0_68, %c0_69] : memref<4x8x8xbf16, #tpu.memory_space<vmem>>, vector<1x8x8xbf16>
      %133 = vector.shape_cast %132 : vector<1x8x8xbf16> to vector<8x8xbf16>
      %134 = vector.shape_cast %131 : vector<8x8xbf16> to vector<1x8x8xbf16>
      tpu.vector_store %arg17[%c0_67, %c0_68, %c0_69], %134 {strides = array<i32>} : memref<4x8x8xbf16, #tpu.memory_space<vmem>>, vector<1x8x8xbf16>,
      %135 = vector.extract_strided_slice %128 {offsets = [0, 0], sizes = [8, 8], strides = [1, 1]} : vector<8x32xbf16> to vector<8x8xbf16>
      %c0_70 = arith.constant 0 : index
      %c0_71 = arith.constant 0 : index
      %c0_72 = arith.constant 0 : index
      %136 = vector.load %arg18[%c0_70, %c0_71, %c0_72] : memref<4x8x8xbf16, #tpu.memory_space<vmem>>, vector<1x8x8xbf16>
      %137 = vector.shape_cast %136 : vector<1x8x8xbf16> to vector<8x8xbf16>
      %138 = vector.shape_cast %135 : vector<8x8xbf16> to vector<1x8x8xbf16>
      tpu.vector_store %arg18[%c0_70, %c0_71, %c0_72], %138 {strides = array<i32>} : memref<4x8x8xbf16, #tpu.memory_space<vmem>>, vector<1x8x8xbf16>,
      %139 = vector.extract_strided_slice %130 {offsets = [0, 0], sizes = [8, 8], strides = [1, 1]} : vector<8x32xbf16> to vector<8x8xbf16>
      %c0_73 = arith.constant 0 : index
      %c0_74 = arith.constant 0 : index
      %c0_75 = arith.constant 0 : index
      %140 = vector.load %arg19[%c0_73, %c0_74, %c0_75] : memref<4x8x8xbf16, #tpu.memory_space<vmem>>, vector<1x8x8xbf16>
      %141 = vector.shape_cast %140 : vector<1x8x8xbf16> to vector<8x8xbf16>
      %142 = vector.shape_cast %139 : vector<8x8xbf16> to vector<1x8x8xbf16>
      tpu.vector_store %arg19[%c0_73, %c0_74, %c0_75], %142 {strides = array<i32>} : memref<4x8x8xbf16, #tpu.memory_space<vmem>>, vector<1x8x8xbf16>,
      %143 = vector.extract_strided_slice %126 {offsets = [0, 8], sizes = [8, 8], strides = [1, 1]} : vector<8x32xbf16> to vector<8x8xbf16>
      %c1 = arith.constant 1 : index
      %c0_76 = arith.constant 0 : index
      %c0_77 = arith.constant 0 : index
      %144 = vector.load %arg17[%c1, %c0_76, %c0_77] : memref<4x8x8xbf16, #tpu.memory_space<vmem>>, vector<1x8x8xbf16>
      %145 = vector.shape_cast %144 : vector<1x8x8xbf16> to vector<8x8xbf16>
      %146 = vector.shape_cast %143 : vector<8x8xbf16> to vector<1x8x8xbf16>
      tpu.vector_store %arg17[%c1, %c0_76, %c0_77], %146 {strides = array<i32>} : memref<4x8x8xbf16, #tpu.memory_space<vmem>>, vector<1x8x8xbf16>,
      %147 = vector.extract_strided_slice %128 {offsets = [0, 8], sizes = [8, 8], strides = [1, 1]} : vector<8x32xbf16> to vector<8x8xbf16>
      %c1_78 = arith.constant 1 : index
      %c0_79 = arith.constant 0 : index
      %c0_80 = arith.constant 0 : index
      %148 = vector.load %arg18[%c1_78, %c0_79, %c0_80] : memref<4x8x8xbf16, #tpu.memory_space<vmem>>, vector<1x8x8xbf16>
      %149 = vector.shape_cast %148 : vector<1x8x8xbf16> to vector<8x8xbf16>
      %150 = vector.shape_cast %147 : vector<8x8xbf16> to vector<1x8x8xbf16>
      tpu.vector_store %arg18[%c1_78, %c0_79, %c0_80], %150 {strides = array<i32>} : memref<4x8x8xbf16, #tpu.memory_space<vmem>>, vector<1x8x8xbf16>,
      %151 = vector.extract_strided_slice %130 {offsets = [0, 8], sizes = [8, 8], strides = [1, 1]} : vector<8x32xbf16> to vector<8x8xbf16>
      %c1_81 = arith.constant 1 : index
      %c0_82 = arith.constant 0 : index
      %c0_83 = arith.constant 0 : index
      %152 = vector.load %arg19[%c1_81, %c0_82, %c0_83] : memref<4x8x8xbf16, #tpu.memory_space<vmem>>, vector<1x8x8xbf16>
      %153 = vector.shape_cast %152 : vector<1x8x8xbf16> to vector<8x8xbf16>
      %154 = vector.shape_cast %151 : vector<8x8xbf16> to vector<1x8x8xbf16>
      tpu.vector_store %arg19[%c1_81, %c0_82, %c0_83], %154 {strides = array<i32>} : memref<4x8x8xbf16, #tpu.memory_space<vmem>>, vector<1x8x8xbf16>,
      %155 = vector.extract_strided_slice %126 {offsets = [0, 16], sizes = [8, 8], strides = [1, 1]} : vector<8x32xbf16> to vector<8x8xbf16>
      %c2 = arith.constant 2 : index
      %c0_84 = arith.constant 0 : index
      %c0_85 = arith.constant 0 : index
      %156 = vector.load %arg17[%c2, %c0_84, %c0_85] : memref<4x8x8xbf16, #tpu.memory_space<vmem>>, vector<1x8x8xbf16>
      %157 = vector.shape_cast %156 : vector<1x8x8xbf16> to vector<8x8xbf16>
      %158 = vector.shape_cast %155 : vector<8x8xbf16> to vector<1x8x8xbf16>
      tpu.vector_store %arg17[%c2, %c0_84, %c0_85], %158 {strides = array<i32>} : memref<4x8x8xbf16, #tpu.memory_space<vmem>>, vector<1x8x8xbf16>,
      %159 = vector.extract_strided_slice %128 {offsets = [0, 16], sizes = [8, 8], strides = [1, 1]} : vector<8x32xbf16> to vector<8x8xbf16>
      %c2_86 = arith.constant 2 : index
      %c0_87 = arith.constant 0 : index
      %c0_88 = arith.constant 0 : index
      %160 = vector.load %arg18[%c2_86, %c0_87, %c0_88] : memref<4x8x8xbf16, #tpu.memory_space<vmem>>, vector<1x8x8xbf16>
      %161 = vector.shape_cast %160 : vector<1x8x8xbf16> to vector<8x8xbf16>
      %162 = vector.shape_cast %159 : vector<8x8xbf16> to vector<1x8x8xbf16>
      tpu.vector_store %arg18[%c2_86, %c0_87, %c0_88], %162 {strides = array<i32>} : memref<4x8x8xbf16, #tpu.memory_space<vmem>>, vector<1x8x8xbf16>,
      %163 = vector.extract_strided_slice %130 {offsets = [0, 16], sizes = [8, 8], strides = [1, 1]} : vector<8x32xbf16> to vector<8x8xbf16>
      %c2_89 = arith.constant 2 : index
      %c0_90 = arith.constant 0 : index
      %c0_91 = arith.constant 0 : index
      %164 = vector.load %arg19[%c2_89, %c0_90, %c0_91] : memref<4x8x8xbf16, #tpu.memory_space<vmem>>, vector<1x8x8xbf16>
      %165 = vector.shape_cast %164 : vector<1x8x8xbf16> to vector<8x8xbf16>
      %166 = vector.shape_cast %163 : vector<8x8xbf16> to vector<1x8x8xbf16>
      tpu.vector_store %arg19[%c2_89, %c0_90, %c0_91], %166 {strides = array<i32>} : memref<4x8x8xbf16, #tpu.memory_space<vmem>>, vector<1x8x8xbf16>,
      %167 = vector.extract_strided_slice %126 {offsets = [0, 24], sizes = [8, 8], strides = [1, 1]} : vector<8x32xbf16> to vector<8x8xbf16>
      %c3 = arith.constant 3 : index
      %c0_92 = arith.constant 0 : index
      %c0_93 = arith.constant 0 : index
      %168 = vector.load %arg17[%c3, %c0_92, %c0_93] : memref<4x8x8xbf16, #tpu.memory_space<vmem>>, vector<1x8x8xbf16>
      %169 = vector.shape_cast %168 : vector<1x8x8xbf16> to vector<8x8xbf16>
      %170 = vector.shape_cast %167 : vector<8x8xbf16> to vector<1x8x8xbf16>
      tpu.vector_store %arg17[%c3, %c0_92, %c0_93], %170 {strides = array<i32>} : memref<4x8x8xbf16, #tpu.memory_space<vmem>>, vector<1x8x8xbf16>,
      %171 = vector.extract_strided_slice %128 {offsets = [0, 24], sizes = [8, 8], strides = [1, 1]} : vector<8x32xbf16> to vector<8x8xbf16>
      %c3_94 = arith.constant 3 : index
      %c0_95 = arith.constant 0 : index
      %c0_96 = arith.constant 0 : index
      %172 = vector.load %arg18[%c3_94, %c0_95, %c0_96] : memref<4x8x8xbf16, #tpu.memory_space<vmem>>, vector<1x8x8xbf16>
      %173 = vector.shape_cast %172 : vector<1x8x8xbf16> to vector<8x8xbf16>
      %174 = vector.shape_cast %171 : vector<8x8xbf16> to vector<1x8x8xbf16>
      tpu.vector_store %arg18[%c3_94, %c0_95, %c0_96], %174 {strides = array<i32>} : memref<4x8x8xbf16, #tpu.memory_space<vmem>>, vector<1x8x8xbf16>,
      %175 = vector.extract_strided_slice %130 {offsets = [0, 24], sizes = [8, 8], strides = [1, 1]} : vector<8x32xbf16> to vector<8x8xbf16>
      %c3_97 = arith.constant 3 : index
      %c0_98 = arith.constant 0 : index
      %c0_99 = arith.constant 0 : index
      %176 = vector.load %arg19[%c3_97, %c0_98, %c0_99] : memref<4x8x8xbf16, #tpu.memory_space<vmem>>, vector<1x8x8xbf16>
      %177 = vector.shape_cast %176 : vector<1x8x8xbf16> to vector<8x8xbf16>
      %178 = vector.shape_cast %175 : vector<8x8xbf16> to vector<1x8x8xbf16>
      tpu.vector_store %arg19[%c3_97, %c0_98, %c0_99], %178 {strides = array<i32>} : memref<4x8x8xbf16, #tpu.memory_space<vmem>>, vector<1x8x8xbf16>,
    } else {
    }
    %c8_i32 = arith.constant 8 : i32
    %3 = arith.muli %arg1, %c8_i32 : i32
    %4 = tpu.assume_multiple %3, 8 : i32
    %c0 = arith.constant 0 : index
    %5 = arith.index_cast %4 : i32 to index
    %c0_1 = arith.constant 0 : index
    %6 = vector.load %arg17[%c0, %5, %c0_1] : memref<4x8x8xbf16, #tpu.memory_space<vmem>>, vector<4x8x8xbf16>
    %c0_2 = arith.constant 0 : index
    %c0_3 = arith.constant 0 : index
    %c0_4 = arith.constant 0 : index
    %7 = vector.load %arg18[%c0_2, %c0_3, %c0_4] : memref<4x8x8xbf16, #tpu.memory_space<vmem>>, vector<4x8x8xbf16>
    %c0_5 = arith.constant 0 : index
    %c0_6 = arith.constant 0 : index
    %c0_7 = arith.constant 0 : index
    %8 = vector.load %arg19[%c0_5, %c0_6, %c0_7] : memref<4x8x8xbf16, #tpu.memory_space<vmem>>, vector<4x8x8xbf16>
    "tpu.trace_start"() <{level = 10 : i32, message = "hqd,hkd->hqk"}> : () -> ()
    %cst = arith.constant dense<0.000000e+00> : vector<4x8x8xf32>
    %9 = tpu.matmul %6, %7, %cst {dimension_numbers = #tpu.dot_dimension_numbers<[2], [2], [1], [1], [0, 0, 0, 1, 1, 1], [0], [0]>} : vector<4x8x8xbf16>, vector<4x8x8xbf16>, vector<4x8x8xf32> -> vector<4x8x8xf32>
    "tpu.trace_stop"() : () -> ()
    %c0_8 = arith.constant 0 : index
    %c0_9 = arith.constant 0 : index
    %c0_10 = arith.constant 0 : index
    %10 = vector.load %arg3[%c0_8, %c0_9, %c0_10] : memref<1x1x8xf32, #tpu.memory_space<vmem>>, vector<1x1x8xf32>
    %11 = vector.shape_cast %10 : vector<1x1x8xf32> to vector<1x8xf32>
    %12 = vector.shape_cast %11 : vector<1x8xf32> to vector<1x1x8xf32>
    %13 = vector.broadcast %12 : vector<1x1x8xf32> to vector<4x8x8xf32>
    %14 = arith.addf %9, %13 : vector<4x8x8xf32>
    %cst_11 = arith.constant dense<0xFF800000> : vector<4x8xf32>
    %15 = vector.multi_reduction <maximumf>, %14, %cst_11 [2] : vector<4x8x8xf32> to vector<4x8xf32>
    %16 = vector.shape_cast %15 : vector<4x8xf32> to vector<4x8x1xf32>
    %17 = vector.broadcast %16 : vector<4x8x1xf32> to vector<4x8x8xf32>
    %18 = arith.subf %14, %17 : vector<4x8x8xf32>
    %19 = math.exp %18 : vector<4x8x8xf32>
    %cst_12 = arith.constant dense<0.000000e+00> : vector<4x8xf32>
    %20 = vector.multi_reduction <add>, %19, %cst_12 [2] : vector<4x8x8xf32> to vector<4x8xf32>
    %21 = vector.shape_cast %20 : vector<4x8xf32> to vector<4x8x1xf32>
    %22 = tpu.reciprocal %21 {approx = true} : vector<4x8x1xf32> -> vector<4x8x1xf32>
    %23 = vector.broadcast %22 : vector<4x8x1xf32> to vector<4x8x8xf32>
    %24 = arith.mulf %19, %23 : vector<4x8x8xf32>
    %25 = arith.truncf %24 : vector<4x8x8xf32> to vector<4x8x8xbf16>
    "tpu.trace_start"() <{level = 10 : i32, message = "hqk,hkd->hqd"}> : () -> ()
    %cst_13 = arith.constant dense<0.000000e+00> : vector<4x8x8xf32>
    %26 = tpu.matmul %25, %8, %cst_13 {dimension_numbers = #tpu.dot_dimension_numbers<[2], [1], [1], [2], [0, 0, 0, 1, 1, 2], [0], [0]>} : vector<4x8x8xbf16>, vector<4x8x8xbf16>, vector<4x8x8xf32> -> vector<4x8x8xf32>
    "tpu.trace_stop"() : () -> ()
    %27 = arith.truncf %26 : vector<4x8x8xf32> to vector<4x8x8xbf16>
    %c0_14 = arith.constant 0 : index
    %c0_15 = arith.constant 0 : index
    %c0_16 = arith.constant 0 : index
    %28 = vector.load %arg6[%c0_14, %c0_15, %c0_16] : memref<4x8x32xbf16, #tpu.memory_space<vmem>>, vector<4x8x32xbf16>
    "tpu.trace_start"() <{level = 10 : i32, message = "hqd,hde->hqe"}> : () -> ()
    %cst_17 = arith.constant dense<0.000000e+00> : vector<4x8x32xf32>
    %29 = tpu.matmul %27, %28, %cst_17 {dimension_numbers = #tpu.dot_dimension_numbers<[2], [1], [1], [2], [0, 0, 0, 1, 1, 2], [0], [0]>} : vector<4x8x8xbf16>, vector<4x8x32xbf16>, vector<4x8x32xf32> -> vector<4x8x32xf32>
    "tpu.trace_stop"() : () -> ()
    %cst_18 = arith.constant dense<0.000000e+00> : vector<8x32xf32>
    %30 = vector.multi_reduction <add>, %29, %cst_18 [0] : vector<4x8x32xf32> to vector<8x32xf32>
    %c0_19 = arith.constant 0 : index
    %c0_20 = arith.constant 0 : index
    %31 = vector.load %arg7[%c0_19, %c0_20] : memref<1x32xf32, #tpu.memory_space<vmem>>, vector<1x32xf32>
    %32 = vector.broadcast %31 : vector<1x32xf32> to vector<8x32xf32>
    %33 = arith.addf %30, %32 : vector<8x32xf32>
    %c0_21 = arith.constant 0 : index
    %34 = arith.index_cast %4 : i32 to index
    %c0_22 = arith.constant 0 : index
    %35 = vector.load %arg2[%c0_21, %34, %c0_22] : memref<1x8x32xf32, #tpu.memory_space<vmem>>, vector<1x8x32xf32>
    %36 = vector.shape_cast %35 : vector<1x8x32xf32> to vector<8x32xf32>
    %37 = arith.addf %36, %33 : vector<8x32xf32>
    %cst_23 = arith.constant dense<0.000000e+00> : vector<8xf32>
    %38 = vector.multi_reduction <add>, %37, %cst_23 [1] : vector<8x32xf32> to vector<8xf32>
    %39 = vector.shape_cast %38 : vector<8xf32> to vector<8x1xf32>
    %cst_24 = arith.constant 3.200000e+01 : f32
    %40 = vector.broadcast %cst_24 : f32 to vector<8x1xf32>
    %41 = arith.divf %39, %40 : vector<8x1xf32>
    %42 = vector.broadcast %41 : vector<8x1xf32> to vector<8x32xf32>
    %43 = arith.subf %37, %42 : vector<8x32xf32>
    %44 = arith.mulf %43, %43 : vector<8x32xf32>
    %cst_25 = arith.constant dense<0.000000e+00> : vector<8xf32>
    %45 = vector.multi_reduction <add>, %44, %cst_25 [1] : vector<8x32xf32> to vector<8xf32>
    %46 = vector.shape_cast %45 : vector<8xf32> to vector<8x1xf32>
    %cst_26 = arith.constant 3.200000e+01 : f32
    %47 = vector.broadcast %cst_26 : f32 to vector<8x1xf32>
    %48 = arith.divf %46, %47 : vector<8x1xf32>
    %49 = vector.broadcast %41 : vector<8x1xf32> to vector<8x32xf32>
    %50 = arith.subf %37, %49 : vector<8x32xf32>
    %cst_27 = arith.constant 9.99999974E-6 : f32
    %51 = vector.broadcast %cst_27 : f32 to vector<8x1xf32>
    %52 = arith.addf %48, %51 : vector<8x1xf32>
    %53 = math.rsqrt %52 : vector<8x1xf32>
    %54 = vector.broadcast %53 : vector<8x1xf32> to vector<8x32xf32>
    %55 = arith.mulf %50, %54 : vector<8x32xf32>
    %c0_28 = arith.constant 0 : index
    %c0_29 = arith.constant 0 : index
    %56 = vector.load %arg8[%c0_28, %c0_29] : memref<1x32xf32, #tpu.memory_space<vmem>>, vector<1x32xf32>
    %57 = vector.broadcast %56 : vector<1x32xf32> to vector<8x32xf32>
    %58 = arith.mulf %55, %57 : vector<8x32xf32>
    %c0_30 = arith.constant 0 : index
    %c0_31 = arith.constant 0 : index
    %59 = vector.load %arg9[%c0_30, %c0_31] : memref<1x32xf32, #tpu.memory_space<vmem>>, vector<1x32xf32>
    %60 = vector.broadcast %59 : vector<1x32xf32> to vector<8x32xf32>
    %61 = arith.addf %58, %60 : vector<8x32xf32>
    %62 = arith.truncf %61 : vector<8x32xf32> to vector<8x32xbf16>
    %c0_32 = arith.constant 0 : index
    %c0_33 = arith.constant 0 : index
    %63 = vector.load %arg10[%c0_32, %c0_33] : memref<32x128xbf16, #tpu.memory_space<vmem>>, vector<32x128xbf16>
    %cst_34 = arith.constant dense<0.000000e+00> : vector<8x128xf32>
    %64 = tpu.matmul %62, %63, %cst_34 {dimension_numbers = #tpu.dot_dimension_numbers<[1], [0], [0], [1], [0, 0, 1, 1], [], []>} : vector<8x32xbf16>, vector<32x128xbf16>, vector<8x128xf32> -> vector<8x128xf32>
    %c0_35 = arith.constant 0 : index
    %c0_36 = arith.constant 0 : index
    %65 = vector.load %arg11[%c0_35, %c0_36] : memref<1x128xf32, #tpu.memory_space<vmem>>, vector<1x128xf32>
    %66 = vector.broadcast %65 : vector<1x128xf32> to vector<8x128xf32>
    %67 = arith.addf %64, %66 : vector<8x128xf32>
    %cst_37 = arith.constant 5.000000e-01 : f32
    %68 = vector.broadcast %cst_37 : f32 to vector<8x128xf32>
    %69 = arith.mulf %68, %67 : vector<8x128xf32>
    %cst_38 = arith.constant 4.471500e-02 : f32
    %70 = vector.broadcast %cst_38 : f32 to vector<8x128xf32>
    %71 = arith.mulf %70, %67 : vector<8x128xf32>
    %72 = arith.mulf %71, %67 : vector<8x128xf32>
    %73 = arith.mulf %72, %67 : vector<8x128xf32>
    %74 = arith.addf %67, %73 : vector<8x128xf32>
    %cst_39 = arith.constant 0.797884583 : f32
    %75 = vector.broadcast %cst_39 : f32 to vector<8x128xf32>
    %76 = arith.mulf %75, %74 : vector<8x128xf32>
    %77 = math.tanh %76 : vector<8x128xf32>
    %cst_40 = arith.constant 1.000000e+00 : f32
    %78 = vector.broadcast %cst_40 : f32 to vector<8x128xf32>
    %79 = arith.addf %78, %77 : vector<8x128xf32>
    %80 = arith.mulf %69, %79 : vector<8x128xf32>
    %81 = arith.truncf %80 : vector<8x128xf32> to vector<8x128xbf16>
    %c0_41 = arith.constant 0 : index
    %c0_42 = arith.constant 0 : index
    %82 = vector.load %arg12[%c0_41, %c0_42] : memref<128x32xbf16, #tpu.memory_space<vmem>>, vector<128x32xbf16>
    %cst_43 = arith.constant dense<0.000000e+00> : vector<8x32xf32>
    %83 = tpu.matmul %81, %82, %cst_43 {dimension_numbers = #tpu.dot_dimension_numbers<[1], [0], [0], [1], [0, 0, 1, 1], [], []>} : vector<8x128xbf16>, vector<128x32xbf16>, vector<8x32xf32> -> vector<8x32xf32>
    %c0_44 = arith.constant 0 : index
    %c0_45 = arith.constant 0 : index
    %84 = vector.load %arg13[%c0_44, %c0_45] : memref<1x32xf32, #tpu.memory_space<vmem>>, vector<1x32xf32>
    %85 = vector.broadcast %84 : vector<1x32xf32> to vector<8x32xf32>
    %86 = arith.addf %83, %85 : vector<8x32xf32>
    %87 = arith.addf %61, %86 : vector<8x32xf32>
    %cst_46 = arith.constant dense<0.000000e+00> : vector<8xf32>
    %88 = vector.multi_reduction <add>, %87, %cst_46 [1] : vector<8x32xf32> to vector<8xf32>
    %89 = vector.shape_cast %88 : vector<8xf32> to vector<8x1xf32>
    %cst_47 = arith.constant 3.200000e+01 : f32
    %90 = vector.broadcast %cst_47 : f32 to vector<8x1xf32>
    %91 = arith.divf %89, %90 : vector<8x1xf32>
    %92 = vector.broadcast %91 : vector<8x1xf32> to vector<8x32xf32>
    %93 = arith.subf %87, %92 : vector<8x32xf32>
    %94 = arith.mulf %93, %93 : vector<8x32xf32>
    %cst_48 = arith.constant dense<0.000000e+00> : vector<8xf32>
    %95 = vector.multi_reduction <add>, %94, %cst_48 [1] : vector<8x32xf32> to vector<8xf32>
    %96 = vector.shape_cast %95 : vector<8xf32> to vector<8x1xf32>
    %cst_49 = arith.constant 3.200000e+01 : f32
    %97 = vector.broadcast %cst_49 : f32 to vector<8x1xf32>
    %98 = arith.divf %96, %97 : vector<8x1xf32>
    %99 = vector.broadcast %91 : vector<8x1xf32> to vector<8x32xf32>
    %100 = arith.subf %87, %99 : vector<8x32xf32>
    %cst_50 = arith.constant 9.99999974E-6 : f32
    %101 = vector.broadcast %cst_50 : f32 to vector<8x1xf32>
    %102 = arith.addf %98, %101 : vector<8x1xf32>
    %103 = math.rsqrt %102 : vector<8x1xf32>
    %104 = vector.broadcast %103 : vector<8x1xf32> to vector<8x32xf32>
    %105 = arith.mulf %100, %104 : vector<8x32xf32>
    %c0_51 = arith.constant 0 : index
    %c0_52 = arith.constant 0 : index
    %106 = vector.load %arg14[%c0_51, %c0_52] : memref<1x32xf32, #tpu.memory_space<vmem>>, vector<1x32xf32>
    %107 = vector.broadcast %106 : vector<1x32xf32> to vector<8x32xf32>
    %108 = arith.mulf %105, %107 : vector<8x32xf32>
    %c0_53 = arith.constant 0 : index
    %c0_54 = arith.constant 0 : index
    %109 = vector.load %arg15[%c0_53, %c0_54] : memref<1x32xf32, #tpu.memory_space<vmem>>, vector<1x32xf32>
    %110 = vector.broadcast %109 : vector<1x32xf32> to vector<8x32xf32>
    %111 = arith.addf %108, %110 : vector<8x32xf32>
    %c0_55 = arith.constant 0 : index
    %c0_56 = arith.constant 0 : index
    %c0_57 = arith.constant 0 : index
    %112 = vector.load %arg16[%c0_55, %c0_56, %c0_57] : memref<1x8x32xf32, #tpu.memory_space<vmem>>, vector<1x8x32xf32>
    %113 = vector.shape_cast %112 : vector<1x8x32xf32> to vector<8x32xf32>
    %114 = vector.shape_cast %111 : vector<8x32xf32> to vector<1x8x32xf32>
    tpu.vector_store %arg16[%c0_55, %c0_56, %c0_57], %114 {strides = array<i32>} : memref<1x8x32xf32, #tpu.memory_space<vmem>>, vector<1x8x32xf32>,
    return
  }
  func.func @transform_0(%arg0: i32, %arg1: i32) -> (i32, i32, i32) {
    %c0_i32 = arith.constant 0 : i32
    %c0_i32_0 = arith.constant 0 : i32
    %c0_i32_1 = arith.constant 0 : i32
    return %arg0, %c0_i32, %c0_i32_0 : i32, i32, i32
  }
  func.func @transform_1(%arg0: i32, %arg1: i32) -> (i32, i32, i32) {
    %c0_i32 = arith.constant 0 : i32
    %c0_i32_0 = arith.constant 0 : i32
    %c0_i32_1 = arith.constant 0 : i32
    return %arg0, %c0_i32, %c0_i32_0 : i32, i32, i32
  }
  func.func @transform_2(%arg0: i32, %arg1: i32) -> (i32, i32) {
    %c0_i32 = arith.constant 0 : i32
    %c0_i32_0 = arith.constant 0 : i32
    %c0_i32_1 = arith.constant 0 : i32
    return %c0_i32, %c0_i32_0 : i32, i32
  }
  func.func @transform_3(%arg0: i32, %arg1: i32) -> (i32, i32) {
    %c0_i32 = arith.constant 0 : i32
    %c0_i32_0 = arith.constant 0 : i32
    %c0_i32_1 = arith.constant 0 : i32
    return %c0_i32, %c0_i32_0 : i32, i32
  }
  func.func @transform_4(%arg0: i32, %arg1: i32) -> (i32, i32, i32) {
    %c0_i32 = arith.constant 0 : i32
    %c0_i32_0 = arith.constant 0 : i32
    %c0_i32_1 = arith.constant 0 : i32
    %c0_i32_2 = arith.constant 0 : i32
    return %c0_i32, %c0_i32_0, %c0_i32_1 : i32, i32, i32
  }
  func.func @transform_5(%arg0: i32, %arg1: i32) -> (i32, i32) {
    %c0_i32 = arith.constant 0 : i32
    %c0_i32_0 = arith.constant 0 : i32
    %c0_i32_1 = arith.constant 0 : i32
    return %c0_i32, %c0_i32_0 : i32, i32
  }
  func.func @transform_6(%arg0: i32, %arg1: i32) -> (i32, i32) {
    %c0_i32 = arith.constant 0 : i32
    %c0_i32_0 = arith.constant 0 : i32
    %c0_i32_1 = arith.constant 0 : i32
    return %c0_i32, %c0_i32_0 : i32, i32
  }
  func.func @transform_7(%arg0: i32, %arg1: i32) -> (i32, i32) {
    %c0_i32 = arith.constant 0 : i32
    %c0_i32_0 = arith.constant 0 : i32
    %c0_i32_1 = arith.constant 0 : i32
    return %c0_i32, %c0_i32_0 : i32, i32
  }
  func.func @transform_8(%arg0: i32, %arg1: i32) -> (i32, i32) {
    %c0_i32 = arith.constant 0 : i32
    %c0_i32_0 = arith.constant 0 : i32
    %c0_i32_1 = arith.constant 0 : i32
    return %c0_i32, %c0_i32_0 : i32, i32
  }
  func.func @transform_9(%arg0: i32, %arg1: i32) -> (i32, i32) {
    %c0_i32 = arith.constant 0 : i32
    %c0_i32_0 = arith.constant 0 : i32
    %c0_i32_1 = arith.constant 0 : i32
    return %c0_i32, %c0_i32_0 : i32, i32
  }
  func.func @transform_10(%arg0: i32, %arg1: i32) -> (i32, i32) {
    %c0_i32 = arith.constant 0 : i32
    %c0_i32_0 = arith.constant 0 : i32
    %c0_i32_1 = arith.constant 0 : i32
    return %c0_i32, %c0_i32_0 : i32, i32
  }
  func.func @transform_11(%arg0: i32, %arg1: i32) -> (i32, i32) {
    %c0_i32 = arith.constant 0 : i32
    %c0_i32_0 = arith.constant 0 : i32
    %c0_i32_1 = arith.constant 0 : i32
    return %c0_i32, %c0_i32_0 : i32, i32
  }
  func.func @transform_12(%arg0: i32, %arg1: i32) -> (i32, i32) {
    %c0_i32 = arith.constant 0 : i32
    %c0_i32_0 = arith.constant 0 : i32
    %c0_i32_1 = arith.constant 0 : i32
    return %c0_i32, %c0_i32_0 : i32, i32
  }
  func.func @transform_13(%arg0: i32, %arg1: i32) -> (i32, i32) {
    %c0_i32 = arith.constant 0 : i32
    %c0_i32_0 = arith.constant 0 : i32
    %c0_i32_1 = arith.constant 0 : i32
    return %c0_i32, %c0_i32_0 : i32, i32
  }
  func.func @transform_14(%arg0: i32, %arg1: i32) -> (i32, i32, i32) {
    %c0_i32 = arith.constant 0 : i32
    %c0_i32_0 = arith.constant 0 : i32
    return %arg0, %arg1, %c0_i32 : i32, i32, i32
  }
}

</mosaic_0001>

<llo_original>
// kernel: tpu_custom_call.1
$region0: #{tpu_custom_call.1}
  #allocation0 [shape = 'u32[]', space=smem, size = 0x4, offset = 0x4, fixed_abs, tag = 'smem constant byte address 0x4 - core index']
  #allocation1 [shape = 'u32[144,128]{1,0:T(1,128)}', space=vmem, size = 0x12000, scoped, tag = 'internal scratch']
  #allocation2 [shape = 'bf16[4,8,8]{2,1,0:T(8,128)(2,1)}', space=vmem, size = 0x2000, scoped, tag = 'scratch operand']
  #allocation3 [shape = 'bf16[4,8,8]{2,1,0:T(8,128)(2,1)}', space=vmem, size = 0x2000, scoped, tag = 'scratch operand']
  #allocation4 [shape = 'bf16[4,8,8]{2,1,0:T(8,128)(2,1)}', space=vmem, size = 0x2000, scoped, tag = 'scratch operand']
  %s0 = inlined_call_operand.hbm [shape: f32[2,8,32], index: 0, kind: input, shape index: {}]
  %s1 = inlined_call_operand.hbm [shape: f32[2,1,8], index: 1, kind: input, shape index: {}]
  %s2 = inlined_call_operand.hbm [shape: bf16[32,96], index: 2, kind: input, shape index: {}]
  %s3 = inlined_call_operand.hbm [shape: f32[1,96], index: 3, kind: input, shape index: {}]
  %s4 = inlined_call_operand.hbm [shape: bf16[4,8,32], index: 4, kind: input, shape index: {}]
  %s5 = inlined_call_operand.hbm [shape: f32[1,32], index: 5, kind: input, shape index: {}]
  %s6 = inlined_call_operand.hbm [shape: f32[1,32], index: 6, kind: input, shape index: {}]
  %s7 = inlined_call_operand.hbm [shape: f32[1,32], index: 7, kind: input, shape index: {}]
  %s8 = inlined_call_operand.hbm [shape: bf16[32,128], index: 8, kind: input, shape index: {}]
  %s9 = inlined_call_operand.hbm [shape: f32[1,128], index: 9, kind: input, shape index: {}]
  %s10 = inlined_call_operand.hbm [shape: bf16[128,32], index: 10, kind: input, shape index: {}]
  %s11 = inlined_call_operand.hbm [shape: f32[1,32], index: 11, kind: input, shape index: {}]
  %s12 = inlined_call_operand.hbm [shape: f32[1,32], index: 12, kind: input, shape index: {}]
  %s13 = inlined_call_operand.hbm [shape: f32[1,32], index: 13, kind: input, shape index: {}]
  %s14 = inlined_call_operand.hbm [shape: f32[2,8,32], index: 14, kind: output, shape index: {}]
  %s15 = sld [smem:[#allocation0]]
  $region149: #{tpu_custom_call.1} parent=0
    _
  %s17 = ssub.s32 1, %s15
  %s18 = scalar_select 0, %s17, %s15
  $region1: #{tpu_custom_call.1} parent=0
    #allocation5 [shape = 'u8[8192]{0}', space=vmem, size = 0x2000, scoped, tag = 'input window, operand 0']
    #allocation6 [shape = 's32[2]{0}', space=sflag, size = 0x8, scoped, tag = 'scoped memory for tpu_custom_call.1']
    #allocation7 [shape = 's32[2]{0}', space=sflag, size = 0x8, scoped, tag = 'scoped memory for tpu_custom_call.1']
    #allocation8 [shape = 'u8[1024]{0}', space=vmem, size = 0x400, scoped, tag = 'input window, operand 1']
    #allocation9 [shape = 's32[2]{0}', space=sflag, size = 0x8, scoped, tag = 'scoped memory for tpu_custom_call.1']
    #allocation10 [shape = 'u8[8192]{0}', space=vmem, size = 0x2000, scoped, tag = 'input window, operand 2, single buffered']
    #allocation11 [shape = 'u8[512]{0}', space=vmem, size = 0x400, scoped, tag = 'input window, operand 3, single buffered']
    #allocation12 [shape = 's32[1]{0}', space=sflag, size = 0x4, scoped, tag = 'scoped memory for tpu_custom_call.1']
    #allocation13 [shape = 'u8[8192]{0}', space=vmem, size = 0x2000, scoped, tag = 'input window, operand 4, single buffered']
    #allocation14 [shape = 'u8[512]{0}', space=vmem, size = 0x400, scoped, tag = 'input window, operand 5, single buffered']
    #allocation15 [shape = 's32[1]{0}', space=sflag, size = 0x4, scoped, tag = 'scoped memory for tpu_custom_call.1']
    #allocation16 [shape = 'u8[512]{0}', space=vmem, size = 0x400, scoped, tag = 'input window, operand 6, single buffered']
    #allocation17 [shape = 'u8[512]{0}', space=vmem, size = 0x400, scoped, tag = 'input window, operand 7, single buffered']
    #allocation18 [shape = 's32[1]{0}', space=sflag, size = 0x4, scoped, tag = 'scoped memory for tpu_custom_call.1']
    #allocation19 [shape = 'u8[8192]{0}', space=vmem, size = 0x2000, scoped, tag = 'input window, operand 8, single buffered']
    #allocation20 [shape = 'u8[512]{0}', space=vmem, size = 0x400, scoped, tag = 'input window, operand 9, single buffered']
    #allocation21 [shape = 's32[1]{0}', space=sflag, size = 0x4, scoped, tag = 'scoped memory for tpu_custom_call.1']
    #allocation22 [shape = 'u8[32768]{0}', space=vmem, size = 0x8000, scoped, tag = 'input window, operand 10, single buffered']
    #allocation23 [shape = 'u8[512]{0}', space=vmem, size = 0x400, scoped, tag = 'input window, operand 11, single buffered']
    #allocation24 [shape = 's32[1]{0}', space=sflag, size = 0x4, scoped, tag = 'scoped memory for tpu_custom_call.1']
    #allocation25 [shape = 'u8[512]{0}', space=vmem, size = 0x400, scoped, tag = 'input window, operand 12, single buffered']
    #allocation26 [shape = 'u8[512]{0}', space=vmem, size = 0x400, scoped, tag = 'input window, operand 13, single buffered']
    #allocation27 [shape = 's32[1]{0}', space=sflag, size = 0x4, scoped, tag = 'scoped memory for tpu_custom_call.1']
    #allocation28 [shape = 'u8[8192]{0}', space=vmem, size = 0x2000, scoped, tag = 'output window, operand 0']
    %19 = vsyncpa [#allocation6], 0
    %s20 = scalar_lea.sflag [#allocation6], 1
    %21 = vsyncpa %s20, 0
    %22 = vsyncpa [#allocation9], 0
    %s23 = scalar_lea.sflag [#allocation9], 1
    %24 = vsyncpa %s23, 0
    %25 = vsyncpa [#allocation12], 0
    %26 = vsyncpa [#allocation15], 0
    %27 = vsyncpa [#allocation18], 0
    %28 = vsyncpa [#allocation21], 0
    %29 = vsyncpa [#allocation24], 0
    %30 = vsyncpa [#allocation27], 0
    %31 = vsyncpa [#allocation7], 0
    %s32 = scalar_lea.sflag [#allocation7], 1
    %33 = vsyncpa %s32, 0
    loop: start=0, step=1, limit=4
    $region2: #{tpu_custom_call.1} parent=1 // loop_pre_header
      _
    $region3: #{tpu_custom_call.1} parent=1 // loop_header
      %s35 = sphi 0, %s39
      %p36 = scmp.ge.s32.totalorder %s35, 4
      %s42 = sphi 0, %s54
      %s43 = sphi 0, %s50
      %s44 = sphi 0, %s42
      %s45 = sphi 0, %s43
      %s46 = sphi 0, %s44
      %s47 = sphi 0, %s45
      %s57 = sphi 0, %s59
      %s60 = sphi 0, %s57
      %s61 = sphi 0, %s60
      %s77 = sphi 0, %s61
      %s83 = sphi 0, %s85
      %s86 = sphi 0, %s83
      %s87 = sphi 0, %s86
      %s103 = sphi 0, %s87
      %s107 = sphi 0, %s107
      %s109 = sphi 0, %s107
      %s110 = sphi 0, %s109
      %s124 = sphi 0, %s110
      %s128 = sphi 0, %s128
      %s130 = sphi 0, %s128
      %s131 = sphi 0, %s130
      %s145 = sphi 0, %s131
      %s149 = sphi 0, %s149
      %s151 = sphi 0, %s149
      %s152 = sphi 0, %s151
      %s166 = sphi 0, %s152
      %s170 = sphi 0, %s170
      %s172 = sphi 0, %s170
      %s173 = sphi 0, %s172
      %s187 = sphi 0, %s173
      %s191 = sphi 0, %s191
      %s193 = sphi 0, %s191
      %s194 = sphi 0, %s193
      %s208 = sphi 0, %s194
      %s212 = sphi 0, %s212
      %s214 = sphi 0, %s212
      %s215 = sphi 0, %s214
      %s229 = sphi 0, %s215
      %s233 = sphi 0, %s233
      %s235 = sphi 0, %s233
      %s236 = sphi 0, %s235
      %s250 = sphi 0, %s236
      %s254 = sphi 0, %s254
      %s256 = sphi 0, %s254
      %s257 = sphi 0, %s256
      %s271 = sphi 0, %s257
      %s275 = sphi 0, %s275
      %s277 = sphi 0, %s275
      %s278 = sphi 0, %s277
      %s292 = sphi 0, %s278
      %s296 = sphi 0, %s296
      %s298 = sphi 0, %s296
      %s299 = sphi 0, %s298
      %s313 = sphi 0, %s299
      %s317 = sphi 0, %s317
      %s319 = sphi 0, %s317
      %s320 = sphi 0, %s319
      %s334 = sphi 0, %s320
      %s338 = sphi 0, %s338
      %s340 = sphi 0, %s338
      %s341 = sphi 0, %s340
      %s355 = sphi 0, %s341
      %s363 = sphi 0, %s365
      %s366 = sphi 0, %s363
      %s367 = sphi 0, %s366
      %s383 = sphi 0, %s367
    $region4: #{tpu_custom_call.1} parent=1 // loop_header_branch
      %38 = sbr.rel (%p36) target = $region8
    $region5: #{tpu_custom_call.1} parent=1 // loop_body
      %s40 = ssub.s32 %s35, 1
      %s41 = ssub.s32 %s35, 2
      %s48 = sadd.s32 1, %s43
      %p49 = scmp.ge.s32.totalorder %s48, 1
      %s50 = scalar_select %p49, 0, %s48
      %s51 = sadd.s32 1, %s42
      %s52 = scalar_select %p49, %s51, %s42
      %p53 = scmp.ge.s32.totalorder %s52, 2
      %s54 = scalar_select %p53, 0, %s52
      %s55 = ssub.s32 %s42, %s54
      %p56 = scmp.eq.s32.totalorder %s55, 0
      %s58 = sadd.s32 %s57, 1
      %s59 = scalar_select %p56, %s57, %s58
      %p62 = pneg %p56
      %p63 = scmp.eq.s32.totalorder %s35, 1
      %p64 = por %p62, %p63
      %p65 = scmp.ne.s32.totalorder %s57, %s60
      %p66 = scmp.eq.s32.totalorder %s35, 0
      %p67 = por %p65, %p66
      %p68 = scmp.ne.s32.totalorder %s57, %s60
      %p69 = scmp.eq.s32.totalorder %s40, 1
      %p70 = por %p68, %p69
      %p71 = scmp.ne.s32.totalorder %s60, %s61
      %p72 = scmp.eq.s32.totalorder %s40, 0
      %p73 = por %p71, %p72
      %p74 = scmp.ne.s32.totalorder %s60, %s61
      %p75 = scmp.eq.s32.totalorder %s41, 1
      %p76 = por %p74, %p75
      %p78 = scmp.ne.s32.totalorder %s61, %s77
      %p79 = scmp.eq.s32.totalorder %s41, 0
      %p80 = por %p78, %p79
      %s81 = ssub.s32 %s42, %s54
      %p82 = scmp.eq.s32.totalorder %s81, 0
      %s84 = sadd.s32 %s83, 1
      %s85 = scalar_select %p82, %s83, %s84
      %p88 = pneg %p82
      %p89 = scmp.eq.s32.totalorder %s35, 1
      %p90 = por %p88, %p89
      %p91 = scmp.ne.s32.totalorder %s83, %s86
      %p92 = scmp.eq.s32.totalorder %s35, 0
      %p93 = por %p91, %p92
      %p94 = scmp.ne.s32.totalorder %s83, %s86
      %p95 = scmp.eq.s32.totalorder %s40, 1
      %p96 = por %p94, %p95
      %p97 = scmp.ne.s32.totalorder %s86, %s87
      %p98 = scmp.eq.s32.totalorder %s40, 0
      %p99 = por %p97, %p98
      %p100 = scmp.ne.s32.totalorder %s86, %s87
      %p101 = scmp.eq.s32.totalorder %s41, 1
      %p102 = por %p100, %p101
      %p104 = scmp.ne.s32.totalorder %s87, %s103
      %p105 = scmp.eq.s32.totalorder %s41, 0
      %p106 = por %p104, %p105
      %s108 = sadd.s32 %s107, 1
      %p111 = scmp.eq.s32.totalorder %s35, 1
      %p112 = scmp.ne.s32.totalorder %s107, %s109
      %p113 = scmp.eq.s32.totalorder %s35, 0
      %p114 = por %p112, %p113
      %p115 = scmp.ne.s32.totalorder %s107, %s109
      %p116 = scmp.eq.s32.totalorder %s40, 1
      %p117 = por %p115, %p116
      %p118 = scmp.ne.s32.totalorder %s109, %s110
      %p119 = scmp.eq.s32.totalorder %s40, 0
      %p120 = por %p118, %p119
      %p121 = scmp.ne.s32.totalorder %s109, %s110
      %p122 = scmp.eq.s32.totalorder %s41, 1
      %p123 = por %p121, %p122
      %p125 = scmp.ne.s32.totalorder %s110, %s124
      %p126 = scmp.eq.s32.totalorder %s41, 0
      %p127 = por %p125, %p126
      %s129 = sadd.s32 %s128, 1
      %p132 = scmp.eq.s32.totalorder %s35, 1
      %p133 = scmp.ne.s32.totalorder %s128, %s130
      %p134 = scmp.eq.s32.totalorder %s35, 0
      %p135 = por %p133, %p134
      %p136 = scmp.ne.s32.totalorder %s128, %s130
      %p137 = scmp.eq.s32.totalorder %s40, 1
      %p138 = por %p136, %p137
      %p139 = scmp.ne.s32.totalorder %s130, %s131
      %p140 = scmp.eq.s32.totalorder %s40, 0
      %p141 = por %p139, %p140
      %p142 = scmp.ne.s32.totalorder %s130, %s131
      %p143 = scmp.eq.s32.totalorder %s41, 1
      %p144 = por %p142, %p143
      %p146 = scmp.ne.s32.totalorder %s131, %s145
      %p147 = scmp.eq.s32.totalorder %s41, 0
      %p148 = por %p146, %p147
      %s150 = sadd.s32 %s149, 1
      %p153 = scmp.eq.s32.totalorder %s35, 1
      %p154 = scmp.ne.s32.totalorder %s149, %s151
      %p155 = scmp.eq.s32.totalorder %s35, 0
      %p156 = por %p154, %p155
      %p157 = scmp.ne.s32.totalorder %s149, %s151
      %p158 = scmp.eq.s32.totalorder %s40, 1
      %p159 = por %p157, %p158
      %p160 = scmp.ne.s32.totalorder %s151, %s152
      %p161 = scmp.eq.s32.totalorder %s40, 0
      %p162 = por %p160, %p161
      %p163 = scmp.ne.s32.totalorder %s151, %s152
      %p164 = scmp.eq.s32.totalorder %s41, 1
      %p165 = por %p163, %p164
      %p167 = scmp.ne.s32.totalorder %s152, %s166
      %p168 = scmp.eq.s32.totalorder %s41, 0
      %p169 = por %p167, %p168
      %s171 = sadd.s32 %s170, 1
      %p174 = scmp.eq.s32.totalorder %s35, 1
      %p175 = scmp.ne.s32.totalorder %s170, %s172
      %p176 = scmp.eq.s32.totalorder %s35, 0
      %p177 = por %p175, %p176
      %p178 = scmp.ne.s32.totalorder %s170, %s172
      %p179 = scmp.eq.s32.totalorder %s40, 1
      %p180 = por %p178, %p179
      %p181 = scmp.ne.s32.totalorder %s172, %s173
      %p182 = scmp.eq.s32.totalorder %s40, 0
      %p183 = por %p181, %p182
      %p184 = scmp.ne.s32.totalorder %s172, %s173
      %p185 = scmp.eq.s32.totalorder %s41, 1
      %p186 = por %p184, %p185
      %p188 = scmp.ne.s32.totalorder %s173, %s187
      %p189 = scmp.eq.s32.totalorder %s41, 0
      %p190 = por %p188, %p189
      %s192 = sadd.s32 %s191, 1
      %p195 = scmp.eq.s32.totalorder %s35, 1
      %p196 = scmp.ne.s32.totalorder %s191, %s193
      %p197 = scmp.eq.s32.totalorder %s35, 0
      %p198 = por %p196, %p197
      %p199 = scmp.ne.s32.totalorder %s191, %s193
      %p200 = scmp.eq.s32.totalorder %s40, 1
      %p201 = por %p199, %p200
      %p202 = scmp.ne.s32.totalorder %s193, %s194
      %p203 = scmp.eq.s32.totalorder %s40, 0
      %p204 = por %p202, %p203
      %p205 = scmp.ne.s32.totalorder %s193, %s194
      %p206 = scmp.eq.s32.totalorder %s41, 1
      %p207 = por %p205, %p206
      %p209 = scmp.ne.s32.totalorder %s194, %s208
      %p210 = scmp.eq.s32.totalorder %s41, 0
      %p211 = por %p209, %p210
      %s213 = sadd.s32 %s212, 1
      %p216 = scmp.eq.s32.totalorder %s35, 1
      %p217 = scmp.ne.s32.totalorder %s212, %s214
      %p218 = scmp.eq.s32.totalorder %s35, 0
      %p219 = por %p217, %p218
      %p220 = scmp.ne.s32.totalorder %s212, %s214
      %p221 = scmp.eq.s32.totalorder %s40, 1
      %p222 = por %p220, %p221
      %p223 = scmp.ne.s32.totalorder %s214, %s215
      %p224 = scmp.eq.s32.totalorder %s40, 0
      %p225 = por %p223, %p224
      %p226 = scmp.ne.s32.totalorder %s214, %s215
      %p227 = scmp.eq.s32.totalorder %s41, 1
      %p228 = por %p226, %p227
      %p230 = scmp.ne.s32.totalorder %s215, %s229
      %p231 = scmp.eq.s32.totalorder %s41, 0
      %p232 = por %p230, %p231
      %s234 = sadd.s32 %s233, 1
      %p237 = scmp.eq.s32.totalorder %s35, 1
      %p238 = scmp.ne.s32.totalorder %s233, %s235
      %p239 = scmp.eq.s32.totalorder %s35, 0
      %p240 = por %p238, %p239
      %p241 = scmp.ne.s32.totalorder %s233, %s235
      %p242 = scmp.eq.s32.totalorder %s40, 1
      %p243 = por %p241, %p242
      %p244 = scmp.ne.s32.totalorder %s235, %s236
      %p245 = scmp.eq.s32.totalorder %s40, 0
      %p246 = por %p244, %p245
      %p247 = scmp.ne.s32.totalorder %s235, %s236
      %p248 = scmp.eq.s32.totalorder %s41, 1
      %p249 = por %p247, %p248
      %p251 = scmp.ne.s32.totalorder %s236, %s250
      %p252 = scmp.eq.s32.totalorder %s41, 0
      %p253 = por %p251, %p252
      %s255 = sadd.s32 %s254, 1
      %p258 = scmp.eq.s32.totalorder %s35, 1
      %p259 = scmp.ne.s32.totalorder %s254, %s256
      %p260 = scmp.eq.s32.totalorder %s35, 0
      %p261 = por %p259, %p260
      %p262 = scmp.ne.s32.totalorder %s254, %s256
      %p263 = scmp.eq.s32.totalorder %s40, 1
      %p264 = por %p262, %p263
      %p265 = scmp.ne.s32.totalorder %s256, %s257
      %p266 = scmp.eq.s32.totalorder %s40, 0
      %p267 = por %p265, %p266
      %p268 = scmp.ne.s32.totalorder %s256, %s257
      %p269 = scmp.eq.s32.totalorder %s41, 1
      %p270 = por %p268, %p269
      %p272 = scmp.ne.s32.totalorder %s257, %s271
      %p273 = scmp.eq.s32.totalorder %s41, 0
      %p274 = por %p272, %p273
      %s276 = sadd.s32 %s275, 1
      %p279 = scmp.eq.s32.totalorder %s35, 1
      %p280 = scmp.ne.s32.totalorder %s275, %s277
      %p281 = scmp.eq.s32.totalorder %s35, 0
      %p282 = por %p280, %p281
      %p283 = scmp.ne.s32.totalorder %s275, %s277
      %p284 = scmp.eq.s32.totalorder %s40, 1
      %p285 = por %p283, %p284
      %p286 = scmp.ne.s32.totalorder %s277, %s278
      %p287 = scmp.eq.s32.totalorder %s40, 0
      %p288 = por %p286, %p287
      %p289 = scmp.ne.s32.totalorder %s277, %s278
      %p290 = scmp.eq.s32.totalorder %s41, 1
      %p291 = por %p289, %p290
      %p293 = scmp.ne.s32.totalorder %s278, %s292
      %p294 = scmp.eq.s32.totalorder %s41, 0
      %p295 = por %p293, %p294
      %s297 = sadd.s32 %s296, 1
      %p300 = scmp.eq.s32.totalorder %s35, 1
      %p301 = scmp.ne.s32.totalorder %s296, %s298
      %p302 = scmp.eq.s32.totalorder %s35, 0
      %p303 = por %p301, %p302
      %p304 = scmp.ne.s32.totalorder %s296, %s298
      %p305 = scmp.eq.s32.totalorder %s40, 1
      %p306 = por %p304, %p305
      %p307 = scmp.ne.s32.totalorder %s298, %s299
      %p308 = scmp.eq.s32.totalorder %s40, 0
      %p309 = por %p307, %p308
      %p310 = scmp.ne.s32.totalorder %s298, %s299
      %p311 = scmp.eq.s32.totalorder %s41, 1
      %p312 = por %p310, %p311
      %p314 = scmp.ne.s32.totalorder %s299, %s313
      %p315 = scmp.eq.s32.totalorder %s41, 0
      %p316 = por %p314, %p315
      %s318 = sadd.s32 %s317, 1
      %p321 = scmp.eq.s32.totalorder %s35, 1
      %p322 = scmp.ne.s32.totalorder %s317, %s319
      %p323 = scmp.eq.s32.totalorder %s35, 0
      %p324 = por %p322, %p323
      %p325 = scmp.ne.s32.totalorder %s317, %s319
      %p326 = scmp.eq.s32.totalorder %s40, 1
      %p327 = por %p325, %p326
      %p328 = scmp.ne.s32.totalorder %s319, %s320
      %p329 = scmp.eq.s32.totalorder %s40, 0
      %p330 = por %p328, %p329
      %p331 = scmp.ne.s32.totalorder %s319, %s320
      %p332 = scmp.eq.s32.totalorder %s41, 1
      %p333 = por %p331, %p332
      %p335 = scmp.ne.s32.totalorder %s320, %s334
      %p336 = scmp.eq.s32.totalorder %s41, 0
      %p337 = por %p335, %p336
      %s339 = sadd.s32 %s338, 1
      %p342 = scmp.eq.s32.totalorder %s35, 1
      %p343 = scmp.ne.s32.totalorder %s338, %s340
      %p344 = scmp.eq.s32.totalorder %s35, 0
      %p345 = por %p343, %p344
      %p346 = scmp.ne.s32.totalorder %s338, %s340
      %p347 = scmp.eq.s32.totalorder %s40, 1
      %p348 = por %p346, %p347
      %p349 = scmp.ne.s32.totalorder %s340, %s341
      %p350 = scmp.eq.s32.totalorder %s40, 0
      %p351 = por %p349, %p350
      %p352 = scmp.ne.s32.totalorder %s340, %s341
      %p353 = scmp.eq.s32.totalorder %s41, 1
      %p354 = por %p352, %p353
      %p356 = scmp.ne.s32.totalorder %s341, %s355
      %p357 = scmp.eq.s32.totalorder %s41, 0
      %p358 = por %p356, %p357
      %s359 = ssub.s32 %s42, %s54
      %s360 = ssub.s32 %s43, %s50
      %s361 = sor.u32 %s359, %s360
      %p362 = scmp.eq.s32.totalorder %s361, 0
      %s364 = sadd.s32 %s363, 1
      %s365 = scalar_select %p362, %s363, %s364
      %p368 = pneg %p362
      %p369 = scmp.eq.s32.totalorder %s35, 1
      %p370 = por %p368, %p369
      %p371 = scmp.ne.s32.totalorder %s363, %s366
      %p372 = scmp.eq.s32.totalorder %s35, 0
      %p373 = por %p371, %p372
      %p374 = scmp.ne.s32.totalorder %s363, %s366
      %p375 = scmp.eq.s32.totalorder %s40, 1
      %p376 = por %p374, %p375
      %p377 = scmp.ne.s32.totalorder %s366, %s367
      %p378 = scmp.eq.s32.totalorder %s40, 0
      %p379 = por %p377, %p378
      %p380 = scmp.ne.s32.totalorder %s366, %s367
      %p381 = scmp.eq.s32.totalorder %s41, 1
      %p382 = por %p380, %p381
      %p384 = scmp.ne.s32.totalorder %s367, %s383
      %p385 = scmp.eq.s32.totalorder %s41, 0
      %p386 = por %p384, %p385
      %p387 = scmp.le.s32.totalorder 1, %s35
      %p388 = scmp.lt.s32.totalorder %s35, 3
      %p389 = pnand %p387, %p388
      %p390 = pneg %p389
      // Predicated region
      $region9: #{tpu_custom_call.1} parent=5 // pred_check
        _
      $region10: #{tpu_custom_call.1} parent=5 // pred_check_branch
        %392 = sbr.rel (%p389) target = $region12
      $region11: #{tpu_custom_call.1} parent=5 // pred_region
        %s393 = ssub.s32 %s35, 1
        // Predicated region
        $region13: #{tpu_custom_call.1} parent=11 // pred_check
          %p394 = pneg %p120
        $region14: #{tpu_custom_call.1} parent=11 // pred_check_branch
          %396 = sbr.rel (%p394) target = $region16
        $region15: #{tpu_custom_call.1} parent=11 // pred_region
          %s398 = ssub.s32 256, 256
          %399 = vsyncadd [#allocation9], %s398
          %s400 = sshll.u32 [#allocation10], 4
          %s401 = int_to_ptr.vmem [resolvable:$true] %s400
          %406 = dma.hbm_to_vmem [thread:$0]  %s2, 256, %s401, [#allocation9], 64, 64, 4
        $region16: #{tpu_custom_call.1} parent=11 // pred_fallthru
          _
        // Predicated region
        $region17: #{tpu_custom_call.1} parent=11 // pred_check
          %p407 = pneg %p141
        $region18: #{tpu_custom_call.1} parent=11 // pred_check_branch
          %409 = sbr.rel (%p407) target = $region20
        $region19: #{tpu_custom_call.1} parent=11 // pred_region
          %s411 = ssub.s32 16, 16
          %412 = vsyncadd [#allocation12], %s411
          %s414 = sshll.u32 [#allocation11], 4
          %s415 = int_to_ptr.vmem [resolvable:$true] %s414
          %417 = dma.hbm_to_vmem [thread:$0]  %s3, 16, %s415, [#allocation12]
        $region20: #{tpu_custom_call.1} parent=11 // pred_fallthru
          _
        // Predicated region
        $region21: #{tpu_custom_call.1} parent=11 // pred_check
          %p418 = pneg %p162
        $region22: #{tpu_custom_call.1} parent=11 // pred_check_branch
          %420 = sbr.rel (%p418) target = $region24
        $region23: #{tpu_custom_call.1} parent=11 // pred_region
          %s422 = ssub.s32 256, 256
          %423 = vsyncadd [#allocation12], %s422
          %s424 = sshll.u32 [#allocation13], 4
          %s425 = int_to_ptr.vmem [resolvable:$true] %s424
          %430 = dma.hbm_to_vmem [thread:$0]  %s4, 256, %s425, [#allocation12], 64, 64, 4
        $region24: #{tpu_custom_call.1} parent=11 // pred_fallthru
          _
        // Predicated region
        $region25: #{tpu_custom_call.1} parent=11 // pred_check
          %p431 = pneg %p183
        $region26: #{tpu_custom_call.1} parent=11 // pred_check_branch
          %433 = sbr.rel (%p431) target = $region28
        $region27: #{tpu_custom_call.1} parent=11 // pred_region
          %s435 = ssub.s32 16, 16
          %436 = vsyncadd [#allocation15], %s435
          %s438 = sshll.u32 [#allocation14], 4
          %s439 = int_to_ptr.vmem [resolvable:$true] %s438
          %441 = dma.hbm_to_vmem [thread:$0]  %s5, 16, %s439, [#allocation15]
        $region28: #{tpu_custom_call.1} parent=11 // pred_fallthru
          _
        // Predicated region
        $region29: #{tpu_custom_call.1} parent=11 // pred_check
          %p442 = pneg %p204
        $region30: #{tpu_custom_call.1} parent=11 // pred_check_branch
          %444 = sbr.rel (%p442) target = $region32
        $region31: #{tpu_custom_call.1} parent=11 // pred_region
          %s446 = ssub.s32 16, 16
          %447 = vsyncadd [#allocation15], %s446
          %s449 = sshll.u32 [#allocation16], 4
          %s450 = int_to_ptr.vmem [resolvable:$true] %s449
          %452 = dma.hbm_to_vmem [thread:$0]  %s6, 16, %s450, [#allocation15]
        $region32: #{tpu_custom_call.1} parent=11 // pred_fallthru
          _
        // Predicated region
        $region33: #{tpu_custom_call.1} parent=11 // pred_check
          %p453 = pneg %p225
        $region34: #{tpu_custom_call.1} parent=11 // pred_check_branch
          %455 = sbr.rel (%p453) target = $region36
        $region35: #{tpu_custom_call.1} parent=11 // pred_region
          %s457 = ssub.s32 16, 16
          %458 = vsyncadd [#allocation18], %s457
          %s460 = sshll.u32 [#allocation17], 4
          %s461 = int_to_ptr.vmem [resolvable:$true] %s460
          %463 = dma.hbm_to_vmem [thread:$0]  %s7, 16, %s461, [#allocation18]
        $region36: #{tpu_custom_call.1} parent=11 // pred_fallthru
          _
        // Predicated region
        $region37: #{tpu_custom_call.1} parent=11 // pred_check
          %p464 = pneg %p246
        $region38: #{tpu_custom_call.1} parent=11 // pred_check_branch
          %466 = sbr.rel (%p464) target = $region40
        $region39: #{tpu_custom_call.1} parent=11 // pred_region
          %s468 = ssub.s32 256, 256
          %469 = vsyncadd [#allocation18], %s468
          %s470 = sshll.u32 [#allocation19], 4
          %s471 = int_to_ptr.vmem [resolvable:$true] %s470
          %476 = dma.hbm_to_vmem [thread:$0]  %s8, 256, %s471, [#allocation18], 64, 64, 4
        $region40: #{tpu_custom_call.1} parent=11 // pred_fallthru
          _
        // Predicated region
        $region41: #{tpu_custom_call.1} parent=11 // pred_check
          %p477 = pneg %p267
        $region42: #{tpu_custom_call.1} parent=11 // pred_check_branch
          %479 = sbr.rel (%p477) target = $region44
        $region43: #{tpu_custom_call.1} parent=11 // pred_region
          %s481 = ssub.s32 16, 16
          %482 = vsyncadd [#allocation21], %s481
          %s484 = sshll.u32 [#allocation20], 4
          %s485 = int_to_ptr.vmem [resolvable:$true] %s484
          %487 = dma.hbm_to_vmem [thread:$0]  %s9, 16, %s485, [#allocation21]
        $region44: #{tpu_custom_call.1} parent=11 // pred_fallthru
          _
        // Predicated region
        $region45: #{tpu_custom_call.1} parent=11 // pred_check
          %p488 = pneg %p288
        $region46: #{tpu_custom_call.1} parent=11 // pred_check_branch
          %490 = sbr.rel (%p488) target = $region48
        $region47: #{tpu_custom_call.1} parent=11 // pred_region
          %s492 = ssub.s32 1024, 1024
          %493 = vsyncadd [#allocation21], %s492
          %s494 = sshll.u32 [#allocation22], 4
          %s495 = int_to_ptr.vmem [resolvable:$true] %s494
          %500 = dma.hbm_to_vmem [thread:$0]  %s10, 1024, %s495, [#allocation21], 64, 64, 4
        $region48: #{tpu_custom_call.1} parent=11 // pred_fallthru
          _
        // Predicated region
        $region49: #{tpu_custom_call.1} parent=11 // pred_check
          %p501 = pneg %p309
        $region50: #{tpu_custom_call.1} parent=11 // pred_check_branch
          %503 = sbr.rel (%p501) target = $region52
        $region51: #{tpu_custom_call.1} parent=11 // pred_region
          %s505 = ssub.s32 16, 16
          %506 = vsyncadd [#allocation24], %s505
          %s508 = sshll.u32 [#allocation23], 4
          %s509 = int_to_ptr.vmem [resolvable:$true] %s508
          %511 = dma.hbm_to_vmem [thread:$0]  %s11, 16, %s509, [#allocation24]
        $region52: #{tpu_custom_call.1} parent=11 // pred_fallthru
          _
        // Predicated region
        $region53: #{tpu_custom_call.1} parent=11 // pred_check
          %p512 = pneg %p330
        $region54: #{tpu_custom_call.1} parent=11 // pred_check_branch
          %514 = sbr.rel (%p512) target = $region56
        $region55: #{tpu_custom_call.1} parent=11 // pred_region
          %s516 = ssub.s32 16, 16
          %517 = vsyncadd [#allocation24], %s516
          %s519 = sshll.u32 [#allocation25], 4
          %s520 = int_to_ptr.vmem [resolvable:$true] %s519
          %522 = dma.hbm_to_vmem [thread:$0]  %s12, 16, %s520, [#allocation24]
        $region56: #{tpu_custom_call.1} parent=11 // pred_fallthru
          _
        // Predicated region
        $region57: #{tpu_custom_call.1} parent=11 // pred_check
          %p523 = pneg %p351
        $region58: #{tpu_custom_call.1} parent=11 // pred_check_branch
          %525 = sbr.rel (%p523) target = $region60
        $region59: #{tpu_custom_call.1} parent=11 // pred_region
          %s527 = ssub.s32 16, 16
          %528 = vsyncadd [#allocation27], %s527
          %s530 = sshll.u32 [#allocation26], 4
          %s531 = int_to_ptr.vmem [resolvable:$true] %s530
          %533 = dma.hbm_to_vmem [thread:$0]  %s13, 16, %s531, [#allocation27]
        $region60: #{tpu_custom_call.1} parent=11 // pred_fallthru
          _
      $region12: #{tpu_custom_call.1} parent=5 // pred_fallthru
        _
      %p534 = scmp.lt.s32.totalorder %s35, 2
      // Predicated region
      $region61: #{tpu_custom_call.1} parent=5 // pred_check
        %p535 = pneg %p534
      $region62: #{tpu_custom_call.1} parent=5 // pred_check_branch
        %537 = sbr.rel (%p535) target = $region64
      $region63: #{tpu_custom_call.1} parent=5 // pred_region
        // Predicated region
        $region65: #{tpu_custom_call.1} parent=63 // pred_check
          %p538 = pneg %p67
        $region66: #{tpu_custom_call.1} parent=63 // pred_check_branch
          %540 = sbr.rel (%p538) target = $region68
        $region67: #{tpu_custom_call.1} parent=63 // pred_region
          %s541 = sand.u32 %s57, 1
          %s542 = scalar_lea.sflag [#allocation6], %s541
          %s543 = sand.u32 %s57, 1
          %s544 = smul.addr %s543, 8
          %s545 = scalar_lea.vmem [#allocation5], %s544
          %s547 = ssub.s32 128, 128
          %548 = vsyncadd %s542, %s547
          %s549 = smul.addr %s42, 128
          %s550 = scalar_lea.hbm %s0, %s549
          %s552 = sshll.u32 %s545, 4
          %s553 = int_to_ptr.vmem [resolvable:$true] %s552
          %555 = dma.hbm_to_vmem [thread:$0]  %s550, 128, %s553, %s542
        $region68: #{tpu_custom_call.1} parent=63 // pred_fallthru
          _
        // Predicated region
        $region69: #{tpu_custom_call.1} parent=63 // pred_check
          %p556 = pneg %p93
        $region70: #{tpu_custom_call.1} parent=63 // pred_check_branch
          %558 = sbr.rel (%p556) target = $region72
        $region71: #{tpu_custom_call.1} parent=63 // pred_region
          %s559 = sand.u32 %s35, 1
          %s560 = scalar_lea.sflag [#allocation9], %s559
          %s561 = sand.u32 %s83, 1
          %s562 = scalar_lea.vmem [#allocation8], %s561
          %s564 = ssub.s32 16, 16
          %565 = vsyncadd %s560, %s564
          %s566 = smul.addr %s42, 16
          %s567 = scalar_lea.hbm %s1, %s566
          %s569 = sshll.u32 %s562, 4
          %s570 = int_to_ptr.vmem [resolvable:$true] %s569
          %572 = dma.hbm_to_vmem [thread:$0]  %s567, 16, %s570, %s560
        $region72: #{tpu_custom_call.1} parent=63 // pred_fallthru
          _
      $region64: #{tpu_custom_call.1} parent=5 // pred_fallthru
        _
      %p573 = scmp.le.s32.totalorder 1, %s35
      %p574 = scmp.lt.s32.totalorder %s35, 3
      %p575 = pnand %p573, %p574
      %p576 = pneg %p575
      // Predicated region
      $region73: #{tpu_custom_call.1} parent=5 // pred_check
        _
      $region74: #{tpu_custom_call.1} parent=5 // pred_check_branch
        %578 = sbr.rel (%p575) target = $region76
      $region75: #{tpu_custom_call.1} parent=5 // pred_region
        %s579 = ssub.s32 %s35, 1
        %s580 = sand.u32 %s60, 1
        %s581 = scalar_lea.sflag [#allocation6], %s580
        %s582 = sand.u32 %s60, 1
        %s583 = smul.addr %s582, 8
        %s584 = scalar_lea.vmem [#allocation5], %s583
        // Predicated region
        $region77: #{tpu_custom_call.1} parent=75 // pred_check
          %p585 = pneg %p73
        $region78: #{tpu_custom_call.1} parent=75 // pred_check_branch
          %587 = sbr.rel (%p585) target = $region80
        $region79: #{tpu_custom_call.1} parent=75 // pred_region
          %588 = dma.done %s581, 128
        $region80: #{tpu_custom_call.1} parent=75 // pred_fallthru
          _
        %s589 = sand.u32 %s40, 1
        %s590 = scalar_lea.sflag [#allocation9], %s589
        %s591 = sand.u32 %s86, 1
        %s592 = scalar_lea.vmem [#allocation8], %s591
        // Predicated region
        $region81: #{tpu_custom_call.1} parent=75 // pred_check
          %p593 = pneg %p99
        $region82: #{tpu_custom_call.1} parent=75 // pred_check_branch
          %595 = sbr.rel (%p593) target = $region84
        $region83: #{tpu_custom_call.1} parent=75 // pred_region
          %596 = dma.done %s590, 16
        $region84: #{tpu_custom_call.1} parent=75 // pred_fallthru
          _
        // Predicated region
        $region85: #{tpu_custom_call.1} parent=75 // pred_check
          %p597 = pneg %p120
        $region86: #{tpu_custom_call.1} parent=75 // pred_check_branch
          %599 = sbr.rel (%p597) target = $region88
        $region87: #{tpu_custom_call.1} parent=75 // pred_region
          %600 = dma.done [#allocation9], 256
        $region88: #{tpu_custom_call.1} parent=75 // pred_fallthru
          _
        // Predicated region
        $region89: #{tpu_custom_call.1} parent=75 // pred_check
          %p601 = pneg %p141
        $region90: #{tpu_custom_call.1} parent=75 // pred_check_branch
          %603 = sbr.rel (%p601) target = $region92
        $region91: #{tpu_custom_call.1} parent=75 // pred_region
          %604 = dma.done [#allocation12], 16
        $region92: #{tpu_custom_call.1} parent=75 // pred_fallthru
          _
        // Predicated region
        $region93: #{tpu_custom_call.1} parent=75 // pred_check
          %p605 = pneg %p162
        $region94: #{tpu_custom_call.1} parent=75 // pred_check_branch
          %607 = sbr.rel (%p605) target = $region96
        $region95: #{tpu_custom_call.1} parent=75 // pred_region
          %608 = dma.done [#allocation12], 256
        $region96: #{tpu_custom_call.1} parent=75 // pred_fallthru
          _
        // Predicated region
        $region97: #{tpu_custom_call.1} parent=75 // pred_check
          %p609 = pneg %p183
        $region98: #{tpu_custom_call.1} parent=75 // pred_check_branch
          %611 = sbr.rel (%p609) target = $region100
        $region99: #{tpu_custom_call.1} parent=75 // pred_region
          %612 = dma.done [#allocation15], 16
        $region100: #{tpu_custom_call.1} parent=75 // pred_fallthru
          _
        // Predicated region
        $region101: #{tpu_custom_call.1} parent=75 // pred_check
          %p613 = pneg %p204
        $region102: #{tpu_custom_call.1} parent=75 // pred_check_branch
          %615 = sbr.rel (%p613) target = $region104
        $region103: #{tpu_custom_call.1} parent=75 // pred_region
          %616 = dma.done [#allocation15], 16
        $region104: #{tpu_custom_call.1} parent=75 // pred_fallthru
          _
        // Predicated region
        $region105: #{tpu_custom_call.1} parent=75 // pred_check
          %p617 = pneg %p225
        $region106: #{tpu_custom_call.1} parent=75 // pred_check_branch
          %619 = sbr.rel (%p617) target = $region108
        $region107: #{tpu_custom_call.1} parent=75 // pred_region
          %620 = dma.done [#allocation18], 16
        $region108: #{tpu_custom_call.1} parent=75 // pred_fallthru
          _
        // Predicated region
        $region109: #{tpu_custom_call.1} parent=75 // pred_check
          %p621 = pneg %p246
        $region110: #{tpu_custom_call.1} parent=75 // pred_check_branch
          %623 = sbr.rel (%p621) target = $region112
        $region111: #{tpu_custom_call.1} parent=75 // pred_region
          %624 = dma.done [#allocation18], 256
        $region112: #{tpu_custom_call.1} parent=75 // pred_fallthru
          _
        // Predicated region
        $region113: #{tpu_custom_call.1} parent=75 // pred_check
          %p625 = pneg %p267
        $region114: #{tpu_custom_call.1} parent=75 // pred_check_branch
          %627 = sbr.rel (%p625) target = $region116
        $region115: #{tpu_custom_call.1} parent=75 // pred_region
          %628 = dma.done [#allocation21], 16
        $region116: #{tpu_custom_call.1} parent=75 // pred_fallthru
          _
        // Predicated region
        $region117: #{tpu_custom_call.1} parent=75 // pred_check
          %p629 = pneg %p288
        $region118: #{tpu_custom_call.1} parent=75 // pred_check_branch
          %631 = sbr.rel (%p629) target = $region120
        $region119: #{tpu_custom_call.1} parent=75 // pred_region
          %632 = dma.done [#allocation21], 1024
        $region120: #{tpu_custom_call.1} parent=75 // pred_fallthru
          _
        // Predicated region
        $region121: #{tpu_custom_call.1} parent=75 // pred_check
          %p633 = pneg %p309
        $region122: #{tpu_custom_call.1} parent=75 // pred_check_branch
          %635 = sbr.rel (%p633) target = $region124
        $region123: #{tpu_custom_call.1} parent=75 // pred_region
          %636 = dma.done [#allocation24], 16
        $region124: #{tpu_custom_call.1} parent=75 // pred_fallthru
          _
        // Predicated region
        $region125: #{tpu_custom_call.1} parent=75 // pred_check
          %p637 = pneg %p330
        $region126: #{tpu_custom_call.1} parent=75 // pred_check_branch
          %639 = sbr.rel (%p637) target = $region128
        $region127: #{tpu_custom_call.1} parent=75 // pred_region
          %640 = dma.done [#allocation24], 16
        $region128: #{tpu_custom_call.1} parent=75 // pred_fallthru
          _
        // Predicated region
        $region129: #{tpu_custom_call.1} parent=75 // pred_check
          %p641 = pneg %p351
        $region130: #{tpu_custom_call.1} parent=75 // pred_check_branch
          %643 = sbr.rel (%p641) target = $region132
        $region131: #{tpu_custom_call.1} parent=75 // pred_region
          %644 = dma.done [#allocation27], 16
        $region132: #{tpu_custom_call.1} parent=75 // pred_fallthru
          _
        %s645 = sand.u32 %s60, 1
        %s646 = scalar_lea.sflag [#allocation6], %s645
        %s647 = sand.u32 %s60, 1
        %s648 = smul.addr %s647, 8
        %s649 = scalar_lea.vmem [#allocation5], %s648
        %p650 = pneg %p73
        %p651 = pneg %p70
        %s652 = sand.u32 %s40, 1
        %s653 = scalar_lea.sflag [#allocation9], %s652
        %s654 = sand.u32 %s86, 1
        %s655 = scalar_lea.vmem [#allocation8], %s654
        %p656 = pneg %p99
        %p657 = pneg %p96
        %p658 = pneg %p120
        %p659 = pneg %p117
        %p660 = pneg %p141
        %p661 = pneg %p138
        %p662 = pneg %p162
        %p663 = pneg %p159
        %p664 = pneg %p183
        %p665 = pneg %p180
        %p666 = pneg %p204
        %p667 = pneg %p201
        %p668 = pneg %p225
        %p669 = pneg %p222
        %p670 = pneg %p246
        %p671 = pneg %p243
        %p672 = pneg %p267
        %p673 = pneg %p264
        %p674 = pneg %p288
        %p675 = pneg %p285
        %p676 = pneg %p309
        %p677 = pneg %p306
        %p678 = pneg %p330
        %p679 = pneg %p327
        %p680 = pneg %p351
        %p681 = pneg %p348
        %p682 = pneg %p379
        %p683 = pneg %p376
        %s684 = sand.u32 %s366, 1
        %s685 = scalar_lea.sflag [#allocation7], %s684
        %s686 = sand.u32 %s366, 1
        %s687 = smul.addr %s686, 8
        %s688 = scalar_lea.vmem [#allocation28], %s687
        %p690 = scmp.eq.s32.totalorder %s45, 0
        // Predicated region
        $region133: #{tpu_custom_call.1} parent=75 // pred_check
          %p691 = pneg %p690
        $region134: #{tpu_custom_call.1} parent=75 // pred_check_branch
          %693 = sbr.rel (%p691) target = $region136
        $region135: #{tpu_custom_call.1} parent=75 // pred_region
          %v694 = vld [vmem:[%s584] sm:$0xff]
          %v695 = vpack.c.bf16 %v694, %v694
          %v696 = vld [vmem:[#allocation10] sm:$0xf]
          %v697 = vld [vmem:[#allocation10 + $0x4] sm:$0xf]
          %v698 = vld [vmem:[#allocation10 + $0x8] sm:$0xf]
          %v699 = vld [vmem:[#allocation10 + $0xc] sm:$0xf]
          %v700 = vld [vmem:[#allocation11] sm:$0x1]
          %v702 = vlaneseq
          %v703 = vshrl.u32 %v702, 7
          %v704 = vsub.s32 0, %v703
          %v705 = vrot.slane %v700, %v704
          %v711 = vunpack.c.l.b16 %v696
          %v712 = vunpack.c.l.b16 %v697
          %v713 = vunpack.c.l.b16 %v698
          %v714 = vunpack.c.l.b16 %v699
          %v715 = vpack.c.b16 %v712, %v711
          %v716 = vpack.c.b16 %v714, %v713
          %vm719 = vcmask 261120
          %v721 = vsel %vm719, %v695, 0
          %723 = vmatprep.subr.bf16.mxu0 0
          %724 = vmatpush1.bf16.msra.mxu0 %v715
          %725 = vmatprep.subr.bf16.mxu0 0
          %726 = vmatpush1.bf16.msra.mxu0 %v716
          %727 = vmatprep.subr.bf16.mxu0 0
          %728 = vmatpush1.bf16.msra.mxu0 0
          %729 = vmatprep.subr.bf16.mxu0 0
          %730 = vmatpush1.bf16.msra.mxu0 0
          %731 = vmatprep.subr.bf16.mxu0 0
          %732 = vmatpush1.bf16.msra.mxu0 0
          %733 = vmatprep.subr.bf16.mxu0 0
          %734 = vmatpush1.bf16.msra.mxu0 0
          %735 = vmatprep.subr.bf16.mxu0 0
          %736 = vmatpush1.bf16.msra.mxu0 0
          %737 = vmatprep.subr.bf16.mxu0 0
          %738 = vmatpush1.bf16.msra.mxu0 0
          %739 = vmatprep.subr.bf16.mxu0 0
          %740 = vmatpush1.bf16.msra.mxu0 0
          %741 = vmatprep.subr.bf16.mxu0 0
          %742 = vmatpush1.bf16.msra.mxu0 0
          %743 = vmatprep.subr.bf16.mxu0 0
          %744 = vmatpush1.bf16.msra.mxu0 0
          %745 = vmatprep.subr.bf16.mxu0 0
          %746 = vmatpush1.bf16.msra.mxu0 0
          %747 = vmatprep.subr.bf16.mxu0 0
          %748 = vmatpush1.bf16.msra.mxu0 0
          %749 = vmatprep.subr.bf16.mxu0 0
          %750 = vmatpush1.bf16.msra.mxu0 0
          %751 = vmatprep.subr.bf16.mxu0 0
          %752 = vmatpush1.bf16.msra.mxu0 0
          %753 = vmatprep.subr.bf16.mxu0 0
          %754 = vmatpush1.bf16.msra.mxu0 0
          %755 = vmatprep.mubr.bf16.mxu0 0
          %756 = vmatmul.mubr.bf16.gmra.mrb[0].mxu0 %v721
          %v757 = vpop.f32.mrb[0].mxu0
          %v758 = vadd.f32 %v705, %v757
          %v759 = vpop.f32.mrb[0].mxu0
          %v760 = vpop.f32.mrb[0].mxu0
          %v761 = vpop.f32.mrb[0].mxu0
          %762 = vdwg.mxu0
          %v763 = vmul.f32 %v758, 0.35355338
          %v764 = vpack.c.bf16 %v763, %v763
          %v765 = vpack.c.bf16 %v758, %v758
          %vm766 = vcmask 60416
          %767 = vst.msk [vmem:[#allocation2] sm:$0xf] %vm766, %v764
          %v769 = vunpack.c.l.b16 %v765
          %v770 = vpack.c.b16 %v769, %v769
          %771 = vrot.lane.b32.xlu0 %v770, 96
          %v772 = vpop.permute.xlu0 %771
          %774 = vst.msk [vmem:[#allocation3] sm:$0xf] %vm766, %v772
          %775 = vrot.lane.b32.xlu0 %v770, 64
          %v776 = vpop.permute.xlu0 %775
          %778 = vst.msk [vmem:[#allocation4] sm:$0xf] %vm766, %v776
          %v780 = vunpack.c.l.b16 %v764
          %v781 = vpack.c.b16 %v780, %v780
          %782 = vrot.lane.b32.xlu0 %v781, 120
          %v783 = vpop.permute.xlu0 %782
          %s785 = scalar_lea.vmem [#allocation2], 4
          %786 = vst.msk [vmem:[%s785] sm:$0xf] %vm766, %v783
          %787 = vrot.lane.b32.xlu0 %v770, 88
          %v788 = vpop.permute.xlu0 %787
          %s790 = scalar_lea.vmem [#allocation3], 4
          %791 = vst.msk [vmem:[%s790] sm:$0xf] %vm766, %v788
          %792 = vrot.lane.b32.xlu0 %v770, 56
          %v793 = vpop.permute.xlu0 %792
          %s795 = scalar_lea.vmem [#allocation4], 4
          %796 = vst.msk [vmem:[%s795] sm:$0xf] %vm766, %v793
          %797 = vrot.lane.b32.xlu0 %v781, 112
          %v798 = vpop.permute.xlu0 %797
          %s800 = scalar_lea.vmem [#allocation2], 8
          %801 = vst.msk [vmem:[%s800] sm:$0xf] %vm766, %v798
          %802 = vrot.lane.b32.xlu0 %v770, 80
          %v803 = vpop.permute.xlu0 %802
          %s805 = scalar_lea.vmem [#allocation3], 8
          %806 = vst.msk [vmem:[%s805] sm:$0xf] %vm766, %v803
          %807 = vrot.lane.b32.xlu0 %v770, 48
          %v808 = vpop.permute.xlu0 %807
          %s810 = scalar_lea.vmem [#allocation4], 8
          %811 = vst.msk [vmem:[%s810] sm:$0xf] %vm766, %v808
          %812 = vrot.lane.b32.xlu0 %v781, 104
          %v813 = vpop.permute.xlu0 %812
          %s815 = scalar_lea.vmem [#allocation2], 12
          %816 = vst.msk [vmem:[%s815] sm:$0xf] %vm766, %v813
          %817 = vrot.lane.b32.xlu0 %v770, 72
          %v818 = vpop.permute.xlu0 %817
          %s820 = scalar_lea.vmem [#allocation3], 12
          %821 = vst.msk [vmem:[%s820] sm:$0xf] %vm766, %v818
          %822 = vrot.lane.b32.xlu0 %v770, 40
          %v823 = vpop.permute.xlu0 %822
          %s825 = scalar_lea.vmem [#allocation4], 12
          %826 = vst.msk [vmem:[%s825] sm:$0xf] %vm766, %v823
        $region136: #{tpu_custom_call.1} parent=75 // pred_fallthru
          _
        %s827 = smul.u32 %s45, 8
        %s828 = sshra.s32 %s827, 3
        %s829 = sand.u32 %s827, 7
        %s830 = smul.addr %s828, 4
        %s831 = scalar_lea.vmem [#allocation2], %s830
        %v832 = vld [vmem:[%s831] sm:$0xf]
        %v833 = vld [vmem:[%s831 + $0x4] sm:$0xf]
        %v834 = vld [vmem:[%s831 + $0x8] sm:$0xf]
        %v835 = vld [vmem:[%s831 + $0xc] sm:$0xf]
        %v836 = vld [vmem:[#allocation3] sm:$0xf]
        %v837 = vld [vmem:[#allocation3 + $0x4] sm:$0xf]
        %v838 = vld [vmem:[#allocation3 + $0x8] sm:$0xf]
        %v839 = vld [vmem:[#allocation3 + $0xc] sm:$0xf]
        %v840 = vld [vmem:[#allocation4] sm:$0xf]
        %v841 = vld [vmem:[#allocation4 + $0x4] sm:$0xf]
        %v842 = vld [vmem:[#allocation4 + $0x8] sm:$0xf]
        %v843 = vld [vmem:[#allocation4 + $0xc] sm:$0xf]
        %v844 = vld [vmem:[%s592] sm:$0x1]
        %v846 = vlaneseq
        %v847 = vshrl.u32 %v846, 7
        %v848 = vsub.s32 0, %v847
        %v849 = vrot.slane %v844, %v848
        %vm851 = vcmask 64512
        %v853 = vsel %vm851, %v832, 0
        %v856 = vsel %vm851, %v836, 0
        %858 = vmatprep.subr.bf16.mxu0 0
        %859 = vmatpush1.bf16.xpose.msra.mxu0 %v856
        %860 = vmatprep.subr.bf16.mxu0 0
        %861 = vmatpush1.bf16.xpose.msra.mxu0 0
        %862 = vmatprep.subr.bf16.mxu0 0
        %863 = vmatpush1.bf16.xpose.msra.mxu0 0
        %864 = vmatprep.subr.bf16.mxu0 0
        %865 = vmatpush1.bf16.xpose.msra.mxu0 0
        %866 = vmatprep.subr.bf16.mxu0 0
        %867 = vmatpush1.bf16.xpose.msra.mxu0 0
        %868 = vmatprep.subr.bf16.mxu0 0
        %869 = vmatpush1.bf16.xpose.msra.mxu0 0
        %870 = vmatprep.subr.bf16.mxu0 0
        %871 = vmatpush1.bf16.xpose.msra.mxu0 0
        %872 = vmatprep.subr.bf16.mxu0 0
        %873 = vmatpush1.bf16.xpose.msra.mxu0 0
        %874 = vmatprep.subr.bf16.mxu0 0
        %875 = vmatpush1.bf16.xpose.msra.mxu0 0
        %876 = vmatprep.subr.bf16.mxu0 0
        %877 = vmatpush1.bf16.xpose.msra.mxu0 0
        %878 = vmatprep.subr.bf16.mxu0 0
        %879 = vmatpush1.bf16.xpose.msra.mxu0 0
        %880 = vmatprep.subr.bf16.mxu0 0
        %881 = vmatpush1.bf16.xpose.msra.mxu0 0
        %882 = vmatprep.subr.bf16.mxu0 0
        %883 = vmatpush1.bf16.xpose.msra.mxu0 0
        %884 = vmatprep.subr.bf16.mxu0 0
        %885 = vmatpush1.bf16.xpose.msra.mxu0 0
        %886 = vmatprep.subr.bf16.mxu0 0
        %887 = vmatpush1.bf16.xpose.msra.mxu0 0
        %888 = vmatprep.subr.bf16.mxu0 0
        %889 = vmatpush1.bf16.xpose.msra.mxu0 0
        %890 = vmatprep.mubr.bf16.mxu0 0
        %891 = vmatmul.mubr.bf16.gmra.mrb[0].mxu0 %v853
        %v892 = vpop.f32.mrb[0].mxu0
        %v893 = vadd.f32 %v849, %v892
        %v894 = vpop.f32.mrb[0].mxu0
        %v895 = vpop.f32.mrb[0].mxu0
        %v896 = vpop.f32.mrb[0].mxu0
        %897 = vdwg.mxu0
        %v899 = vsel %vm851, %v833, 0
        %v902 = vsel %vm851, %v837, 0
        %904 = vmatprep.subr.bf16.mxu0 0
        %905 = vmatpush1.bf16.xpose.msra.mxu0 %v902
        %906 = vmatprep.subr.bf16.mxu0 0
        %907 = vmatpush1.bf16.xpose.msra.mxu0 0
        %908 = vmatprep.subr.bf16.mxu0 0
        %909 = vmatpush1.bf16.xpose.msra.mxu0 0
        %910 = vmatprep.subr.bf16.mxu0 0
        %911 = vmatpush1.bf16.xpose.msra.mxu0 0
        %912 = vmatprep.subr.bf16.mxu0 0
        %913 = vmatpush1.bf16.xpose.msra.mxu0 0
        %914 = vmatprep.subr.bf16.mxu0 0
        %915 = vmatpush1.bf16.xpose.msra.mxu0 0
        %916 = vmatprep.subr.bf16.mxu0 0
        %917 = vmatpush1.bf16.xpose.msra.mxu0 0
        %918 = vmatprep.subr.bf16.mxu0 0
        %919 = vmatpush1.bf16.xpose.msra.mxu0 0
        %920 = vmatprep.subr.bf16.mxu0 0
        %921 = vmatpush1.bf16.xpose.msra.mxu0 0
        %922 = vmatprep.subr.bf16.mxu0 0
        %923 = vmatpush1.bf16.xpose.msra.mxu0 0
        %924 = vmatprep.subr.bf16.mxu0 0
        %925 = vmatpush1.bf16.xpose.msra.mxu0 0
        %926 = vmatprep.subr.bf16.mxu0 0
        %927 = vmatpush1.bf16.xpose.msra.mxu0 0
        %928 = vmatprep.subr.bf16.mxu0 0
        %929 = vmatpush1.bf16.xpose.msra.mxu0 0
        %930 = vmatprep.subr.bf16.mxu0 0
        %931 = vmatpush1.bf16.xpose.msra.mxu0 0
        %932 = vmatprep.subr.bf16.mxu0 0
        %933 = vmatpush1.bf16.xpose.msra.mxu0 0
        %934 = vmatprep.subr.bf16.mxu0 0
        %935 = vmatpush1.bf16.xpose.msra.mxu0 0
        %936 = vmatprep.mubr.bf16.mxu0 0
        %937 = vmatmul.mubr.bf16.gmra.mrb[0].mxu0 %v899
        %v938 = vpop.f32.mrb[0].mxu0
        %v939 = vadd.f32 %v849, %v938
        %v940 = vpop.f32.mrb[0].mxu0
        %v941 = vpop.f32.mrb[0].mxu0
        %v942 = vpop.f32.mrb[0].mxu0
        %943 = vdwg.mxu0
        %v945 = vsel %vm851, %v834, 0
        %v948 = vsel %vm851, %v838, 0
        %950 = vmatprep.subr.bf16.mxu0 0
        %951 = vmatpush1.bf16.xpose.msra.mxu0 %v948
        %952 = vmatprep.subr.bf16.mxu0 0
        %953 = vmatpush1.bf16.xpose.msra.mxu0 0
        %954 = vmatprep.subr.bf16.mxu0 0
        %955 = vmatpush1.bf16.xpose.msra.mxu0 0
        %956 = vmatprep.subr.bf16.mxu0 0
        %957 = vmatpush1.bf16.xpose.msra.mxu0 0
        %958 = vmatprep.subr.bf16.mxu0 0
        %959 = vmatpush1.bf16.xpose.msra.mxu0 0
        %960 = vmatprep.subr.bf16.mxu0 0
        %961 = vmatpush1.bf16.xpose.msra.mxu0 0
        %962 = vmatprep.subr.bf16.mxu0 0
        %963 = vmatpush1.bf16.xpose.msra.mxu0 0
        %964 = vmatprep.subr.bf16.mxu0 0
        %965 = vmatpush1.bf16.xpose.msra.mxu0 0
        %966 = vmatprep.subr.bf16.mxu0 0
        %967 = vmatpush1.bf16.xpose.msra.mxu0 0
        %968 = vmatprep.subr.bf16.mxu0 0
        %969 = vmatpush1.bf16.xpose.msra.mxu0 0
        %970 = vmatprep.subr.bf16.mxu0 0
        %971 = vmatpush1.bf16.xpose.msra.mxu0 0
        %972 = vmatprep.subr.bf16.mxu0 0
        %973 = vmatpush1.bf16.xpose.msra.mxu0 0
        %974 = vmatprep.subr.bf16.mxu0 0
        %975 = vmatpush1.bf16.xpose.msra.mxu0 0
        %976 = vmatprep.subr.bf16.mxu0 0
        %977 = vmatpush1.bf16.xpose.msra.mxu0 0
        %978 = vmatprep.subr.bf16.mxu0 0
        %979 = vmatpush1.bf16.xpose.msra.mxu0 0
        %980 = vmatprep.subr.bf16.mxu0 0
        %981 = vmatpush1.bf16.xpose.msra.mxu0 0
        %982 = vmatprep.mubr.bf16.mxu0 0
        %983 = vmatmul.mubr.bf16.gmra.mrb[0].mxu0 %v945
        %v984 = vpop.f32.mrb[0].mxu0
        %v985 = vadd.f32 %v849, %v984
        %v986 = vpop.f32.mrb[0].mxu0
        %v987 = vpop.f32.mrb[0].mxu0
        %v988 = vpop.f32.mrb[0].mxu0
        %989 = vdwg.mxu0
        %v991 = vsel %vm851, %v835, 0
        %v994 = vsel %vm851, %v839, 0
        %996 = vmatprep.subr.bf16.mxu0 0
        %997 = vmatpush1.bf16.xpose.msra.mxu0 %v994
        %998 = vmatprep.subr.bf16.mxu0 0
        %999 = vmatpush1.bf16.xpose.msra.mxu0 0
        %1000 = vmatprep.subr.bf16.mxu0 0
        %1001 = vmatpush1.bf16.xpose.msra.mxu0 0
        %1002 = vmatprep.subr.bf16.mxu0 0
        %1003 = vmatpush1.bf16.xpose.msra.mxu0 0
        %1004 = vmatprep.subr.bf16.mxu0 0
        %1005 = vmatpush1.bf16.xpose.msra.mxu0 0
        %1006 = vmatprep.subr.bf16.mxu0 0
        %1007 = vmatpush1.bf16.xpose.msra.mxu0 0
        %1008 = vmatprep.subr.bf16.mxu0 0
        %1009 = vmatpush1.bf16.xpose.msra.mxu0 0
        %1010 = vmatprep.subr.bf16.mxu0 0
        %1011 = vmatpush1.bf16.xpose.msra.mxu0 0
        %1012 = vmatprep.subr.bf16.mxu0 0
        %1013 = vmatpush1.bf16.xpose.msra.mxu0 0
        %1014 = vmatprep.subr.bf16.mxu0 0
        %1015 = vmatpush1.bf16.xpose.msra.mxu0 0
        %1016 = vmatprep.subr.bf16.mxu0 0
        %1017 = vmatpush1.bf16.xpose.msra.mxu0 0
        %1018 = vmatprep.subr.bf16.mxu0 0
        %1019 = vmatpush1.bf16.xpose.msra.mxu0 0
        %1020 = vmatprep.subr.bf16.mxu0 0
        %1021 = vmatpush1.bf16.xpose.msra.mxu0 0
        %1022 = vmatprep.subr.bf16.mxu0 0
        %1023 = vmatpush1.bf16.xpose.msra.mxu0 0
        %1024 = vmatprep.subr.bf16.mxu0 0
        %1025 = vmatpush1.bf16.xpose.msra.mxu0 0
        %1026 = vmatprep.subr.bf16.mxu0 0
        %1027 = vmatpush1.bf16.xpose.msra.mxu0 0
        %1028 = vmatprep.mubr.bf16.mxu0 0
        %1029 = vmatmul.mubr.bf16.gmra.mrb[0].mxu0 %v991
        %v1030 = vpop.f32.mrb[0].mxu0
        %v1031 = vadd.f32 %v849, %v1030
        %v1032 = vpop.f32.mrb[0].mxu0
        %v1033 = vpop.f32.mrb[0].mxu0
        %v1034 = vpop.f32.mrb[0].mxu0
        %1035 = vdwg.mxu0
        %v1036 = vsel %vm851, %v893, -inf
        %1037 = vmax.xlane.f32.xlu0 %v1036
        %v1038 = vpop.xlane.xlu0 %1037
        %v1039 = vsel %vm851, %v939, -inf
        %1040 = vmax.xlane.f32.xlu0 %v1039
        %v1041 = vpop.xlane.xlu0 %1040
        %v1042 = vsel %vm851, %v985, -inf
        %1043 = vmax.xlane.f32.xlu0 %v1042
        %v1044 = vpop.xlane.xlu0 %1043
        %v1045 = vsel %vm851, %v1031, -inf
        %1046 = vmax.xlane.f32.xlu0 %v1045
        %v1047 = vpop.xlane.xlu0 %1046
        %v1048 = vsub.f32 %v893, %v1038
        %v1049 = vsub.f32 %v939, %v1041
        %v1050 = vsub.f32 %v985, %v1044
        %v1051 = vsub.f32 %v1031, %v1047
        %v1052 = vmul.f32 %v1048, 1.442695
        %v1053 = vpow.pop %v1052
        %v1054 = vmul.f32 %v1049, 1.442695
        %v1055 = vpow.pop %v1054
        %v1056 = vmul.f32 %v1050, 1.442695
        %v1057 = vpow.pop %v1056
        %v1058 = vmul.f32 %v1051, 1.442695
        %v1059 = vpow.pop %v1058
        %v1060 = vsel %vm851, %v1053, 0.0
        %1061 = vadd.xlane.f32.xlu0 %v1060
        %v1062 = vpop.xlane.xlu0 %1061
        %v1063 = vsel %vm851, %v1055, 0.0
        %1064 = vadd.xlane.f32.xlu0 %v1063
        %v1065 = vpop.xlane.xlu0 %1064
        %v1066 = vsel %vm851, %v1057, 0.0
        %1067 = vadd.xlane.f32.xlu0 %v1066
        %v1068 = vpop.xlane.xlu0 %1067
        %v1069 = vsel %vm851, %v1059, 0.0
        %1070 = vadd.xlane.f32.xlu0 %v1069
        %v1071 = vpop.xlane.xlu0 %1070
        %v1072 = vrcp.pop %v1062
        %v1073 = vrcp.pop %v1065
        %v1074 = vrcp.pop %v1068
        %v1075 = vrcp.pop %v1071
        %v1076 = vmul.f32 %v1053, %v1072
        %v1077 = vmul.f32 %v1055, %v1073
        %v1078 = vmul.f32 %v1057, %v1074
        %v1079 = vmul.f32 %v1059, %v1075
        %v1080 = vpack.c.bf16 %v1076, %v1076
        %v1081 = vpack.c.bf16 %v1077, %v1077
        %v1082 = vpack.c.bf16 %v1078, %v1078
        %v1083 = vpack.c.bf16 %v1079, %v1079
        %v1085 = vsel %vm851, %v1080, 0
        %vm1087 = vcmask 1043456
        %v1089 = vsel %vm1087, %v840, 0
        %1091 = vmatprep.subr.bf16.mxu0 0
        %1092 = vmatpush1.bf16.msra.mxu0 %v1089
        %1093 = vmatprep.subr.bf16.mxu0 0
        %1094 = vmatpush1.bf16.msra.mxu0 0
        %1095 = vmatprep.subr.bf16.mxu0 0
        %1096 = vmatpush1.bf16.msra.mxu0 0
        %1097 = vmatprep.subr.bf16.mxu0 0
        %1098 = vmatpush1.bf16.msra.mxu0 0
        %1099 = vmatprep.subr.bf16.mxu0 0
        %1100 = vmatpush1.bf16.msra.mxu0 0
        %1101 = vmatprep.subr.bf16.mxu0 0
        %1102 = vmatpush1.bf16.msra.mxu0 0
        %1103 = vmatprep.subr.bf16.mxu0 0
        %1104 = vmatpush1.bf16.msra.mxu0 0
        %1105 = vmatprep.subr.bf16.mxu0 0
        %1106 = vmatpush1.bf16.msra.mxu0 0
        %1107 = vmatprep.subr.bf16.mxu0 0
        %1108 = vmatpush1.bf16.msra.mxu0 0
        %1109 = vmatprep.subr.bf16.mxu0 0
        %1110 = vmatpush1.bf16.msra.mxu0 0
        %1111 = vmatprep.subr.bf16.mxu0 0
        %1112 = vmatpush1.bf16.msra.mxu0 0
        %1113 = vmatprep.subr.bf16.mxu0 0
        %1114 = vmatpush1.bf16.msra.mxu0 0
        %1115 = vmatprep.subr.bf16.mxu0 0
        %1116 = vmatpush1.bf16.msra.mxu0 0
        %1117 = vmatprep.subr.bf16.mxu0 0
        %1118 = vmatpush1.bf16.msra.mxu0 0
        %1119 = vmatprep.subr.bf16.mxu0 0
        %1120 = vmatpush1.bf16.msra.mxu0 0
        %1121 = vmatprep.subr.bf16.mxu0 0
        %1122 = vmatpush1.bf16.msra.mxu0 0
        %1123 = vmatprep.mubr.bf16.mxu0 0
        %1124 = vmatmul.mubr.bf16.gmra.mrb[0].mxu0 %v1085
        %v1125 = vpop.f32.mrb[0].mxu0
        %v1126 = vadd.f32 0.0, %v1125
        %v1127 = vpop.f32.mrb[0].mxu0
        %v1128 = vpop.f32.mrb[0].mxu0
        %v1129 = vpop.f32.mrb[0].mxu0
        %1130 = vdwg.mxu0
        %v1132 = vsel %vm851, %v1081, 0
        %v1135 = vsel %vm1087, %v841, 0
        %1137 = vmatprep.subr.bf16.mxu0 0
        %1138 = vmatpush1.bf16.msra.mxu0 %v1135
        %1139 = vmatprep.subr.bf16.mxu0 0
        %1140 = vmatpush1.bf16.msra.mxu0 0
        %1141 = vmatprep.subr.bf16.mxu0 0
        %1142 = vmatpush1.bf16.msra.mxu0 0
        %1143 = vmatprep.subr.bf16.mxu0 0
        %1144 = vmatpush1.bf16.msra.mxu0 0
        %1145 = vmatprep.subr.bf16.mxu0 0
        %1146 = vmatpush1.bf16.msra.mxu0 0
        %1147 = vmatprep.subr.bf16.mxu0 0
        %1148 = vmatpush1.bf16.msra.mxu0 0
        %1149 = vmatprep.subr.bf16.mxu0 0
        %1150 = vmatpush1.bf16.msra.mxu0 0
        %1151 = vmatprep.subr.bf16.mxu0 0
        %1152 = vmatpush1.bf16.msra.mxu0 0
        %1153 = vmatprep.subr.bf16.mxu0 0
        %1154 = vmatpush1.bf16.msra.mxu0 0
        %1155 = vmatprep.subr.bf16.mxu0 0
        %1156 = vmatpush1.bf16.msra.mxu0 0
        %1157 = vmatprep.subr.bf16.mxu0 0
        %1158 = vmatpush1.bf16.msra.mxu0 0
        %1159 = vmatprep.subr.bf16.mxu0 0
        %1160 = vmatpush1.bf16.msra.mxu0 0
        %1161 = vmatprep.subr.bf16.mxu0 0
        %1162 = vmatpush1.bf16.msra.mxu0 0
        %1163 = vmatprep.subr.bf16.mxu0 0
        %1164 = vmatpush1.bf16.msra.mxu0 0
        %1165 = vmatprep.subr.bf16.mxu0 0
        %1166 = vmatpush1.bf16.msra.mxu0 0
        %1167 = vmatprep.subr.bf16.mxu0 0
        %1168 = vmatpush1.bf16.msra.mxu0 0
        %1169 = vmatprep.mubr.bf16.mxu0 0
        %1170 = vmatmul.mubr.bf16.gmra.mrb[0].mxu0 %v1132
        %v1171 = vpop.f32.mrb[0].mxu0
        %v1172 = vadd.f32 0.0, %v1171
        %v1173 = vpop.f32.mrb[0].mxu0
        %v1174 = vpop.f32.mrb[0].mxu0
        %v1175 = vpop.f32.mrb[0].mxu0
        %1176 = vdwg.mxu0
        %v1178 = vsel %vm851, %v1082, 0
        %v1181 = vsel %vm1087, %v842, 0
        %1183 = vmatprep.subr.bf16.mxu0 0
        %1184 = vmatpush1.bf16.msra.mxu0 %v1181
        %1185 = vmatprep.subr.bf16.mxu0 0
        %1186 = vmatpush1.bf16.msra.mxu0 0
        %1187 = vmatprep.subr.bf16.mxu0 0
        %1188 = vmatpush1.bf16.msra.mxu0 0
        %1189 = vmatprep.subr.bf16.mxu0 0
        %1190 = vmatpush1.bf16.msra.mxu0 0
        %1191 = vmatprep.subr.bf16.mxu0 0
        %1192 = vmatpush1.bf16.msra.mxu0 0
        %1193 = vmatprep.subr.bf16.mxu0 0
        %1194 = vmatpush1.bf16.msra.mxu0 0
        %1195 = vmatprep.subr.bf16.mxu0 0
        %1196 = vmatpush1.bf16.msra.mxu0 0
        %1197 = vmatprep.subr.bf16.mxu0 0
        %1198 = vmatpush1.bf16.msra.mxu0 0
        %1199 = vmatprep.subr.bf16.mxu0 0
        %1200 = vmatpush1.bf16.msra.mxu0 0
        %1201 = vmatprep.subr.bf16.mxu0 0
        %1202 = vmatpush1.bf16.msra.mxu0 0
        %1203 = vmatprep.subr.bf16.mxu0 0
        %1204 = vmatpush1.bf16.msra.mxu0 0
        %1205 = vmatprep.subr.bf16.mxu0 0
        %1206 = vmatpush1.bf16.msra.mxu0 0
        %1207 = vmatprep.subr.bf16.mxu0 0
        %1208 = vmatpush1.bf16.msra.mxu0 0
        %1209 = vmatprep.subr.bf16.mxu0 0
        %1210 = vmatpush1.bf16.msra.mxu0 0
        %1211 = vmatprep.subr.bf16.mxu0 0
        %1212 = vmatpush1.bf16.msra.mxu0 0
        %1213 = vmatprep.subr.bf16.mxu0 0
        %1214 = vmatpush1.bf16.msra.mxu0 0
        %1215 = vmatprep.mubr.bf16.mxu0 0
        %1216 = vmatmul.mubr.bf16.gmra.mrb[0].mxu0 %v1178
        %v1217 = vpop.f32.mrb[0].mxu0
        %v1218 = vadd.f32 0.0, %v1217
        %v1219 = vpop.f32.mrb[0].mxu0
        %v1220 = vpop.f32.mrb[0].mxu0
        %v1221 = vpop.f32.mrb[0].mxu0
        %1222 = vdwg.mxu0
        %v1224 = vsel %vm851, %v1083, 0
        %v1227 = vsel %vm1087, %v843, 0
        %1229 = vmatprep.subr.bf16.mxu0 0
        %1230 = vmatpush1.bf16.msra.mxu0 %v1227
        %1231 = vmatprep.subr.bf16.mxu0 0
        %1232 = vmatpush1.bf16.msra.mxu0 0
        %1233 = vmatprep.subr.bf16.mxu0 0
        %1234 = vmatpush1.bf16.msra.mxu0 0
        %1235 = vmatprep.subr.bf16.mxu0 0
        %1236 = vmatpush1.bf16.msra.mxu0 0
        %1237 = vmatprep.subr.bf16.mxu0 0
        %1238 = vmatpush1.bf16.msra.mxu0 0
        %1239 = vmatprep.subr.bf16.mxu0 0
        %1240 = vmatpush1.bf16.msra.mxu0 0
        %1241 = vmatprep.subr.bf16.mxu0 0
        %1242 = vmatpush1.bf16.msra.mxu0 0
        %1243 = vmatprep.subr.bf16.mxu0 0
        %1244 = vmatpush1.bf16.msra.mxu0 0
        %1245 = vmatprep.subr.bf16.mxu0 0
        %1246 = vmatpush1.bf16.msra.mxu0 0
        %1247 = vmatprep.subr.bf16.mxu0 0
        %1248 = vmatpush1.bf16.msra.mxu0 0
        %1249 = vmatprep.subr.bf16.mxu0 0
        %1250 = vmatpush1.bf16.msra.mxu0 0
        %1251 = vmatprep.subr.bf16.mxu0 0
        %1252 = vmatpush1.bf16.msra.mxu0 0
        %1253 = vmatprep.subr.bf16.mxu0 0
        %1254 = vmatpush1.bf16.msra.mxu0 0
        %1255 = vmatprep.subr.bf16.mxu0 0
        %1256 = vmatpush1.bf16.msra.mxu0 0
        %1257 = vmatprep.subr.bf16.mxu0 0
        %1258 = vmatpush1.bf16.msra.mxu0 0
        %1259 = vmatprep.subr.bf16.mxu0 0
        %1260 = vmatpush1.bf16.msra.mxu0 0
        %1261 = vmatprep.mubr.bf16.mxu0 0
        %1262 = vmatmul.mubr.bf16.gmra.mrb[0].mxu0 %v1224
        %v1263 = vpop.f32.mrb[0].mxu0
        %v1264 = vadd.f32 0.0, %v1263
        %v1265 = vpop.f32.mrb[0].mxu0
        %v1266 = vpop.f32.mrb[0].mxu0
        %v1267 = vpop.f32.mrb[0].mxu0
        %1268 = vdwg.mxu0
        %v1269 = vpack.c.bf16 %v1126, %v1126
        %v1270 = vpack.c.bf16 %v1172, %v1172
        %v1271 = vpack.c.bf16 %v1218, %v1218
        %v1272 = vpack.c.bf16 %v1264, %v1264
        %v1273 = vld [vmem:[#allocation13] sm:$0xf]
        %v1274 = vld [vmem:[#allocation13 + $0x4] sm:$0xf]
        %v1275 = vld [vmem:[#allocation13 + $0x8] sm:$0xf]
        %v1276 = vld [vmem:[#allocation13 + $0xc] sm:$0xf]
        %v1278 = vsel %vm851, %v1269, 0
        %v1281 = vsel %vm1087, %v1273, 0
        %1283 = vmatprep.subr.bf16.mxu0 0
        %1284 = vmatpush1.bf16.msra.mxu0 %v1281
        %1285 = vmatprep.subr.bf16.mxu0 0
        %1286 = vmatpush1.bf16.msra.mxu0 0
        %1287 = vmatprep.subr.bf16.mxu0 0
        %1288 = vmatpush1.bf16.msra.mxu0 0
        %1289 = vmatprep.subr.bf16.mxu0 0
        %1290 = vmatpush1.bf16.msra.mxu0 0
        %1291 = vmatprep.subr.bf16.mxu0 0
        %1292 = vmatpush1.bf16.msra.mxu0 0
        %1293 = vmatprep.subr.bf16.mxu0 0
        %1294 = vmatpush1.bf16.msra.mxu0 0
        %1295 = vmatprep.subr.bf16.mxu0 0
        %1296 = vmatpush1.bf16.msra.mxu0 0
        %1297 = vmatprep.subr.bf16.mxu0 0
        %1298 = vmatpush1.bf16.msra.mxu0 0
        %1299 = vmatprep.subr.bf16.mxu0 0
        %1300 = vmatpush1.bf16.msra.mxu0 0
        %1301 = vmatprep.subr.bf16.mxu0 0
        %1302 = vmatpush1.bf16.msra.mxu0 0
        %1303 = vmatprep.subr.bf16.mxu0 0
        %1304 = vmatpush1.bf16.msra.mxu0 0
        %1305 = vmatprep.subr.bf16.mxu0 0
        %1306 = vmatpush1.bf16.msra.mxu0 0
        %1307 = vmatprep.subr.bf16.mxu0 0
        %1308 = vmatpush1.bf16.msra.mxu0 0
        %1309 = vmatprep.subr.bf16.mxu0 0
        %1310 = vmatpush1.bf16.msra.mxu0 0
        %1311 = vmatprep.subr.bf16.mxu0 0
        %1312 = vmatpush1.bf16.msra.mxu0 0
        %1313 = vmatprep.subr.bf16.mxu0 0
        %1314 = vmatpush1.bf16.msra.mxu0 0
        %1315 = vmatprep.mubr.bf16.mxu0 0
        %1316 = vmatmul.mubr.bf16.gmra.mrb[0].mxu0 %v1278
        %v1317 = vpop.f32.mrb[0].mxu0
        %v1318 = vadd.f32 0.0, %v1317
        %v1319 = vpop.f32.mrb[0].mxu0
        %v1320 = vpop.f32.mrb[0].mxu0
        %v1321 = vpop.f32.mrb[0].mxu0
        %1322 = vdwg.mxu0
        %v1324 = vsel %vm851, %v1270, 0
        %v1327 = vsel %vm1087, %v1274, 0
        %1329 = vmatprep.subr.bf16.mxu0 0
        %1330 = vmatpush1.bf16.msra.mxu0 %v1327
        %1331 = vmatprep.subr.bf16.mxu0 0
        %1332 = vmatpush1.bf16.msra.mxu0 0
        %1333 = vmatprep.subr.bf16.mxu0 0
        %1334 = vmatpush1.bf16.msra.mxu0 0
        %1335 = vmatprep.subr.bf16.mxu0 0
        %1336 = vmatpush1.bf16.msra.mxu0 0
        %1337 = vmatprep.subr.bf16.mxu0 0
        %1338 = vmatpush1.bf16.msra.mxu0 0
        %1339 = vmatprep.subr.bf16.mxu0 0
        %1340 = vmatpush1.bf16.msra.mxu0 0
        %1341 = vmatprep.subr.bf16.mxu0 0
        %1342 = vmatpush1.bf16.msra.mxu0 0
        %1343 = vmatprep.subr.bf16.mxu0 0
        %1344 = vmatpush1.bf16.msra.mxu0 0
        %1345 = vmatprep.subr.bf16.mxu0 0
        %1346 = vmatpush1.bf16.msra.mxu0 0
        %1347 = vmatprep.subr.bf16.mxu0 0
        %1348 = vmatpush1.bf16.msra.mxu0 0
        %1349 = vmatprep.subr.bf16.mxu0 0
        %1350 = vmatpush1.bf16.msra.mxu0 0
        %1351 = vmatprep.subr.bf16.mxu0 0
        %1352 = vmatpush1.bf16.msra.mxu0 0
        %1353 = vmatprep.subr.bf16.mxu0 0
        %1354 = vmatpush1.bf16.msra.mxu0 0
        %1355 = vmatprep.subr.bf16.mxu0 0
        %1356 = vmatpush1.bf16.msra.mxu0 0
        %1357 = vmatprep.subr.bf16.mxu0 0
        %1358 = vmatpush1.bf16.msra.mxu0 0
        %1359 = vmatprep.subr.bf16.mxu0 0
        %1360 = vmatpush1.bf16.msra.mxu0 0
        %1361 = vmatprep.mubr.bf16.mxu0 0
        %1362 = vmatmul.mubr.bf16.gmra.mrb[0].mxu0 %v1324
        %v1363 = vpop.f32.mrb[0].mxu0
        %v1364 = vadd.f32 0.0, %v1363
        %v1365 = vpop.f32.mrb[0].mxu0
        %v1366 = vpop.f32.mrb[0].mxu0
        %v1367 = vpop.f32.mrb[0].mxu0
        %1368 = vdwg.mxu0
        %v1370 = vsel %vm851, %v1271, 0
        %v1373 = vsel %vm1087, %v1275, 0
        %1375 = vmatprep.subr.bf16.mxu0 0
        %1376 = vmatpush1.bf16.msra.mxu0 %v1373
        %1377 = vmatprep.subr.bf16.mxu0 0
        %1378 = vmatpush1.bf16.msra.mxu0 0
        %1379 = vmatprep.subr.bf16.mxu0 0
        %1380 = vmatpush1.bf16.msra.mxu0 0
        %1381 = vmatprep.subr.bf16.mxu0 0
        %1382 = vmatpush1.bf16.msra.mxu0 0
        %1383 = vmatprep.subr.bf16.mxu0 0
        %1384 = vmatpush1.bf16.msra.mxu0 0
        %1385 = vmatprep.subr.bf16.mxu0 0
        %1386 = vmatpush1.bf16.msra.mxu0 0
        %1387 = vmatprep.subr.bf16.mxu0 0
        %1388 = vmatpush1.bf16.msra.mxu0 0
        %1389 = vmatprep.subr.bf16.mxu0 0
        %1390 = vmatpush1.bf16.msra.mxu0 0
        %1391 = vmatprep.subr.bf16.mxu0 0
        %1392 = vmatpush1.bf16.msra.mxu0 0
        %1393 = vmatprep.subr.bf16.mxu0 0
        %1394 = vmatpush1.bf16.msra.mxu0 0
        %1395 = vmatprep.subr.bf16.mxu0 0
        %1396 = vmatpush1.bf16.msra.mxu0 0
        %1397 = vmatprep.subr.bf16.mxu0 0
        %1398 = vmatpush1.bf16.msra.mxu0 0
        %1399 = vmatprep.subr.bf16.mxu0 0
        %1400 = vmatpush1.bf16.msra.mxu0 0
        %1401 = vmatprep.subr.bf16.mxu0 0
        %1402 = vmatpush1.bf16.msra.mxu0 0
        %1403 = vmatprep.subr.bf16.mxu0 0
        %1404 = vmatpush1.bf16.msra.mxu0 0
        %1405 = vmatprep.subr.bf16.mxu0 0
        %1406 = vmatpush1.bf16.msra.mxu0 0
        %1407 = vmatprep.mubr.bf16.mxu0 0
        %1408 = vmatmul.mubr.bf16.gmra.mrb[0].mxu0 %v1370
        %v1409 = vpop.f32.mrb[0].mxu0
        %v1410 = vadd.f32 0.0, %v1409
        %v1411 = vpop.f32.mrb[0].mxu0
        %v1412 = vpop.f32.mrb[0].mxu0
        %v1413 = vpop.f32.mrb[0].mxu0
        %1414 = vdwg.mxu0
        %v1416 = vsel %vm851, %v1272, 0
        %v1419 = vsel %vm1087, %v1276, 0
        %1421 = vmatprep.subr.bf16.mxu0 0
        %1422 = vmatpush1.bf16.msra.mxu0 %v1419
        %1423 = vmatprep.subr.bf16.mxu0 0
        %1424 = vmatpush1.bf16.msra.mxu0 0
        %1425 = vmatprep.subr.bf16.mxu0 0
        %1426 = vmatpush1.bf16.msra.mxu0 0
        %1427 = vmatprep.subr.bf16.mxu0 0
        %1428 = vmatpush1.bf16.msra.mxu0 0
        %1429 = vmatprep.subr.bf16.mxu0 0
        %1430 = vmatpush1.bf16.msra.mxu0 0
        %1431 = vmatprep.subr.bf16.mxu0 0
        %1432 = vmatpush1.bf16.msra.mxu0 0
        %1433 = vmatprep.subr.bf16.mxu0 0
        %1434 = vmatpush1.bf16.msra.mxu0 0
        %1435 = vmatprep.subr.bf16.mxu0 0
        %1436 = vmatpush1.bf16.msra.mxu0 0
        %1437 = vmatprep.subr.bf16.mxu0 0
        %1438 = vmatpush1.bf16.msra.mxu0 0
        %1439 = vmatprep.subr.bf16.mxu0 0
        %1440 = vmatpush1.bf16.msra.mxu0 0
        %1441 = vmatprep.subr.bf16.mxu0 0
        %1442 = vmatpush1.bf16.msra.mxu0 0
        %1443 = vmatprep.subr.bf16.mxu0 0
        %1444 = vmatpush1.bf16.msra.mxu0 0
        %1445 = vmatprep.subr.bf16.mxu0 0
        %1446 = vmatpush1.bf16.msra.mxu0 0
        %1447 = vmatprep.subr.bf16.mxu0 0
        %1448 = vmatpush1.bf16.msra.mxu0 0
        %1449 = vmatprep.subr.bf16.mxu0 0
        %1450 = vmatpush1.bf16.msra.mxu0 0
        %1451 = vmatprep.subr.bf16.mxu0 0
        %1452 = vmatpush1.bf16.msra.mxu0 0
        %1453 = vmatprep.mubr.bf16.mxu0 0
        %1454 = vmatmul.mubr.bf16.gmra.mrb[0].mxu0 %v1416
        %v1455 = vpop.f32.mrb[0].mxu0
        %v1456 = vadd.f32 0.0, %v1455
        %v1457 = vpop.f32.mrb[0].mxu0
        %v1458 = vpop.f32.mrb[0].mxu0
        %v1459 = vpop.f32.mrb[0].mxu0
        %1460 = vdwg.mxu0
        %vm1461 = vcmask 261120
        %v1462 = vsel %vm1461, %v1318, 0.0
        %v1463 = vsel %vm1461, %v1364, 0.0
        %v1464 = vadd.f32 %v1462, %v1463
        %v1465 = vsel %vm1461, %v1410, 0.0
        %v1466 = vadd.f32 %v1464, %v1465
        %v1467 = vsel %vm1461, %v1456, 0.0
        %v1468 = vadd.f32 %v1466, %v1467
        %v1469 = vld [vmem:[#allocation14] sm:$0x1]
        %v1471 = vlaneseq
        %v1472 = vshrl.u32 %v1471, 7
        %v1473 = vsub.s32 0, %v1472
        %v1474 = vrot.slane %v1469, %v1473
        %v1476 = vadd.f32 %v1468, %v1474
        %s1477 = scalar_lea.vmem %s584, %s827 [#allocation5]
        %v1478 = vld [vmem:[%s1477] sm:$0xff]
        %v1479 = vadd.f32 %v1478, %v1476
        %v1480 = vsel %vm1461, %v1479, 0.0
        %1481 = vadd.xlane.f32.xlu0 %v1480
        %v1482 = vpop.xlane.xlu0 %1481
        %v1483 = vrcp.pop 32.0
        %v1484 = vmul.f32 %v1482, %v1483
        %v1485 = vsub.f32 %v1479, %v1484
        %v1486 = vmul.f32 %v1485, %v1485
        %v1487 = vsel %vm1461, %v1486, 0.0
        %1488 = vadd.xlane.f32.xlu0 %v1487
        %v1489 = vpop.xlane.xlu0 %1488
        %v1490 = vmul.f32 %v1489, %v1483
        %v1491 = vadd.f32 %v1490, 1e-05
        %v1492 = vrsqrt.pop %v1491
        %v1493 = vmul.f32 %v1485, %v1492
        %v1494 = vld [vmem:[#allocation16] sm:$0x1]
        %v1496 = vlaneseq
        %v1497 = vshrl.u32 %v1496, 7
        %v1498 = vsub.s32 0, %v1497
        %v1499 = vrot.slane %v1494, %v1498
        %v1501 = vmul.f32 %v1493, %v1499
        %v1502 = vld [vmem:[#allocation17] sm:$0x1]
        %v1504 = vlaneseq
        %v1505 = vshrl.u32 %v1504, 7
        %v1506 = vsub.s32 0, %v1505
        %v1507 = vrot.slane %v1502, %v1506
        %v1509 = vadd.f32 %v1501, %v1507
        %v1510 = vpack.c.bf16 %v1509, %v1509
        %v1511 = vld [vmem:[#allocation19] sm:$0xf]
        %v1512 = vld [vmem:[#allocation19 + $0x4] sm:$0xf]
        %v1513 = vld [vmem:[#allocation19 + $0x8] sm:$0xf]
        %v1514 = vld [vmem:[#allocation19 + $0xc] sm:$0xf]
        %v1515 = vld [vmem:[#allocation20] sm:$0x1]
        %v1517 = vlaneseq
        %v1518 = vshrl.u32 %v1517, 7
        %v1519 = vsub.s32 0, %v1518
        %v1520 = vrot.slane %v1515, %v1519
        %v1526 = vunpack.c.l.b16 %v1511
        %v1527 = vunpack.c.l.b16 %v1512
        %v1528 = vunpack.c.l.b16 %v1513
        %v1529 = vunpack.c.l.b16 %v1514
        %v1530 = vpack.c.b16 %v1527, %v1526
        %v1531 = vpack.c.b16 %v1529, %v1528
        %v1535 = vsel %vm1461, %v1510, 0
        %1537 = vmatprep.subr.bf16.mxu0 0
        %1538 = vmatpush1.bf16.msra.mxu0 %v1530
        %1539 = vmatprep.subr.bf16.mxu0 0
        %1540 = vmatpush1.bf16.msra.mxu0 %v1531
        %1541 = vmatprep.subr.bf16.mxu0 0
        %1542 = vmatpush1.bf16.msra.mxu0 0
        %1543 = vmatprep.subr.bf16.mxu0 0
        %1544 = vmatpush1.bf16.msra.mxu0 0
        %1545 = vmatprep.subr.bf16.mxu0 0
        %1546 = vmatpush1.bf16.msra.mxu0 0
        %1547 = vmatprep.subr.bf16.mxu0 0
        %1548 = vmatpush1.bf16.msra.mxu0 0
        %1549 = vmatprep.subr.bf16.mxu0 0
        %1550 = vmatpush1.bf16.msra.mxu0 0
        %1551 = vmatprep.subr.bf16.mxu0 0
        %1552 = vmatpush1.bf16.msra.mxu0 0
        %1553 = vmatprep.subr.bf16.mxu0 0
        %1554 = vmatpush1.bf16.msra.mxu0 0
        %1555 = vmatprep.subr.bf16.mxu0 0
        %1556 = vmatpush1.bf16.msra.mxu0 0
        %1557 = vmatprep.subr.bf16.mxu0 0
        %1558 = vmatpush1.bf16.msra.mxu0 0
        %1559 = vmatprep.subr.bf16.mxu0 0
        %1560 = vmatpush1.bf16.msra.mxu0 0
        %1561 = vmatprep.subr.bf16.mxu0 0
        %1562 = vmatpush1.bf16.msra.mxu0 0
        %1563 = vmatprep.subr.bf16.mxu0 0
        %1564 = vmatpush1.bf16.msra.mxu0 0
        %1565 = vmatprep.subr.bf16.mxu0 0
        %1566 = vmatpush1.bf16.msra.mxu0 0
        %1567 = vmatprep.subr.bf16.mxu0 0
        %1568 = vmatpush1.bf16.msra.mxu0 0
        %1569 = vmatprep.mubr.bf16.mxu0 0
        %1570 = vmatmul.mubr.bf16.gmra.mrb[0].mxu0 %v1535
        %v1571 = vpop.f32.mrb[0].mxu0
        %v1572 = vadd.f32 %v1520, %v1571
        %v1573 = vpop.f32.mrb[0].mxu0
        %v1574 = vpop.f32.mrb[0].mxu0
        %v1575 = vpop.f32.mrb[0].mxu0
        %1576 = vdwg.mxu0
        %v1577 = vmul.f32 %v1572, 0.5
        %v1578 = vmul.f32 %v1572, 0.044715
        %v1579 = vmul.f32 %v1578, %v1572
        %v1580 = vmul.f32 %v1579, %v1572
        %v1581 = vadd.f32 %v1572, %v1580
        %v1582 = vmul.f32 %v1581, 0.7978846
        %v1583 = vtanh.pop %v1582
        %v1584 = vadd.f32 %v1583, 1.0
        %v1585 = vmul.f32 %v1577, %v1584
        %v1586 = vpack.c.bf16 %v1585, %v1585
        %v1587 = vld [vmem:[#allocation22] sm:$0xf]
        %v1588 = vld [vmem:[#allocation22 + $0x4] sm:$0xf]
        %v1589 = vld [vmem:[#allocation22 + $0x8] sm:$0xf]
        %v1590 = vld [vmem:[#allocation22 + $0xc] sm:$0xf]
        %v1591 = vld [vmem:[#allocation22 + $0x10] sm:$0xf]
        %v1592 = vld [vmem:[#allocation22 + $0x14] sm:$0xf]
        %v1593 = vld [vmem:[#allocation22 + $0x18] sm:$0xf]
        %v1594 = vld [vmem:[#allocation22 + $0x1c] sm:$0xf]
        %v1595 = vld [vmem:[#allocation22 + $0x20] sm:$0xf]
        %v1596 = vld [vmem:[#allocation22 + $0x24] sm:$0xf]
        %v1597 = vld [vmem:[#allocation22 + $0x28] sm:$0xf]
        %v1598 = vld [vmem:[#allocation22 + $0x2c] sm:$0xf]
        %v1599 = vld [vmem:[#allocation22 + $0x30] sm:$0xf]
        %v1600 = vld [vmem:[#allocation22 + $0x34] sm:$0xf]
        %v1601 = vld [vmem:[#allocation22 + $0x38] sm:$0xf]
        %v1602 = vld [vmem:[#allocation22 + $0x3c] sm:$0xf]
        %v1603 = vld [vmem:[#allocation23] sm:$0x1]
        %v1605 = vlaneseq
        %v1606 = vshrl.u32 %v1605, 7
        %v1607 = vsub.s32 0, %v1606
        %v1608 = vrot.slane %v1603, %v1607
        %v1626 = vunpack.c.l.b16 %v1587
        %v1627 = vunpack.c.l.b16 %v1588
        %v1628 = vunpack.c.l.b16 %v1589
        %v1629 = vunpack.c.l.b16 %v1590
        %v1630 = vunpack.c.l.b16 %v1591
        %v1631 = vunpack.c.l.b16 %v1592
        %v1632 = vunpack.c.l.b16 %v1593
        %v1633 = vunpack.c.l.b16 %v1594
        %v1634 = vunpack.c.l.b16 %v1595
        %v1635 = vunpack.c.l.b16 %v1596
        %v1636 = vunpack.c.l.b16 %v1597
        %v1637 = vunpack.c.l.b16 %v1598
        %v1638 = vunpack.c.l.b16 %v1599
        %v1639 = vunpack.c.l.b16 %v1600
        %v1640 = vunpack.c.l.b16 %v1601
        %v1641 = vunpack.c.l.b16 %v1602
        %v1642 = vpack.c.b16 %v1627, %v1626
        %v1643 = vpack.c.b16 %v1629, %v1628
        %v1644 = vpack.c.b16 %v1631, %v1630
        %v1645 = vpack.c.b16 %v1633, %v1632
        %v1646 = vpack.c.b16 %v1635, %v1634
        %v1647 = vpack.c.b16 %v1637, %v1636
        %v1648 = vpack.c.b16 %v1639, %v1638
        %v1649 = vpack.c.b16 %v1641, %v1640
        %1658 = vmatprep.subr.bf16.mxu0 0
        %1659 = vmatpush1.bf16.msra.mxu0 %v1642
        %1660 = vmatprep.subr.bf16.mxu0 0
        %1661 = vmatpush1.bf16.msra.mxu0 %v1643
        %1662 = vmatprep.subr.bf16.mxu0 0
        %1663 = vmatpush1.bf16.msra.mxu0 %v1644
        %1664 = vmatprep.subr.bf16.mxu0 0
        %1665 = vmatpush1.bf16.msra.mxu0 %v1645
        %1666 = vmatprep.subr.bf16.mxu0 0
        %1667 = vmatpush1.bf16.msra.mxu0 %v1646
        %1668 = vmatprep.subr.bf16.mxu0 0
        %1669 = vmatpush1.bf16.msra.mxu0 %v1647
        %1670 = vmatprep.subr.bf16.mxu0 0
        %1671 = vmatpush1.bf16.msra.mxu0 %v1648
        %1672 = vmatprep.subr.bf16.mxu0 0
        %1673 = vmatpush1.bf16.msra.mxu0 %v1649
        %1674 = vmatprep.subr.bf16.mxu0 0
        %1675 = vmatpush1.bf16.msra.mxu0 0
        %1676 = vmatprep.subr.bf16.mxu0 0
        %1677 = vmatpush1.bf16.msra.mxu0 0
        %1678 = vmatprep.subr.bf16.mxu0 0
        %1679 = vmatpush1.bf16.msra.mxu0 0
        %1680 = vmatprep.subr.bf16.mxu0 0
        %1681 = vmatpush1.bf16.msra.mxu0 0
        %1682 = vmatprep.subr.bf16.mxu0 0
        %1683 = vmatpush1.bf16.msra.mxu0 0
        %1684 = vmatprep.subr.bf16.mxu0 0
        %1685 = vmatpush1.bf16.msra.mxu0 0
        %1686 = vmatprep.subr.bf16.mxu0 0
        %1687 = vmatpush1.bf16.msra.mxu0 0
        %1688 = vmatprep.subr.bf16.mxu0 0
        %1689 = vmatpush1.bf16.msra.mxu0 0
        %1690 = vmatprep.mubr.bf16.mxu0 0
        %1691 = vmatmul.mubr.bf16.gmra.mrb[0].mxu0 %v1586
        %v1692 = vpop.f32.mrb[0].mxu0
        %v1693 = vadd.f32 %v1608, %v1692
        %v1694 = vpop.f32.mrb[0].mxu0
        %v1695 = vpop.f32.mrb[0].mxu0
        %v1696 = vpop.f32.mrb[0].mxu0
        %1697 = vdwg.mxu0
        %v1698 = vadd.f32 %v1509, %v1693
        %v1699 = vsel %vm1461, %v1698, 0.0
        %1700 = vadd.xlane.f32.xlu0 %v1699
        %v1701 = vpop.xlane.xlu0 %1700
        %v1702 = vmul.f32 %v1701, %v1483
        %v1703 = vsub.f32 %v1698, %v1702
        %v1704 = vmul.f32 %v1703, %v1703
        %v1705 = vsel %vm1461, %v1704, 0.0
        %1706 = vadd.xlane.f32.xlu0 %v1705
        %v1707 = vpop.xlane.xlu0 %1706
        %v1708 = vmul.f32 %v1707, %v1483
        %v1709 = vadd.f32 %v1708, 1e-05
        %v1710 = vrsqrt.pop %v1709
        %v1711 = vmul.f32 %v1703, %v1710
        %v1712 = vld [vmem:[#allocation25] sm:$0x1]
        %v1714 = vlaneseq
        %v1715 = vshrl.u32 %v1714, 7
        %v1716 = vsub.s32 0, %v1715
        %v1717 = vrot.slane %v1712, %v1716
        %v1719 = vmul.f32 %v1711, %v1717
        %v1720 = vld [vmem:[#allocation26] sm:$0x1]
        %v1722 = vlaneseq
        %v1723 = vshrl.u32 %v1722, 7
        %v1724 = vsub.s32 0, %v1723
        %v1725 = vrot.slane %v1720, %v1724
        %v1727 = vadd.f32 %v1719, %v1725
        %1728 = vst.msk [vmem:[%s688] sm:$0xff] %vm1461, %v1727
        %s1729 = sand.u32 %s366, 1
        %s1730 = scalar_lea.sflag [#allocation7], %s1729
        %s1731 = sand.u32 %s366, 1
        %s1732 = smul.addr %s1731, 8
        %s1733 = scalar_lea.vmem [#allocation28], %s1732
        // Predicated region
        $region137: #{tpu_custom_call.1} parent=75 // pred_check
          %p1734 = pneg %p376
        $region138: #{tpu_custom_call.1} parent=75 // pred_check_branch
          %1736 = sbr.rel (%p1734) target = $region140
        $region139: #{tpu_custom_call.1} parent=75 // pred_region
          %s1738 = ssub.s32 128, 128
          %1739 = vsyncadd %s1730, %s1738
          %s1740 = sadd.s32 %s45, %s44
          %s1741 = smul.addr %s1740, 128
          %s1742 = scalar_lea.hbm %s14, %s1741
          %s1744 = sshll.u32 %s1733, 4
          %s1745 = int_to_ptr.vmem [resolvable:$true] %s1744
          %1747 = dma.vmem_to_hbm [thread:$0]  %s1745, 128, %s1742, %s1730
        $region140: #{tpu_custom_call.1} parent=75 // pred_fallthru
          _
      $region76: #{tpu_custom_call.1} parent=5 // pred_fallthru
        _
      %p1748 = scmp.le.s32.totalorder 2, %s35
      // Predicated region
      $region141: #{tpu_custom_call.1} parent=5 // pred_check
        %p1749 = pneg %p1748
      $region142: #{tpu_custom_call.1} parent=5 // pred_check_branch
        %1751 = sbr.rel (%p1749) target = $region144
      $region143: #{tpu_custom_call.1} parent=5 // pred_region
        %s1752 = ssub.s32 %s35, 2
        // Predicated region
        $region145: #{tpu_custom_call.1} parent=143 // pred_check
          %p1753 = pneg %p382
        $region146: #{tpu_custom_call.1} parent=143 // pred_check_branch
          %1755 = sbr.rel (%p1753) target = $region148
        $region147: #{tpu_custom_call.1} parent=143 // pred_region
          %s1756 = sand.u32 %s367, 1
          %s1757 = scalar_lea.sflag [#allocation7], %s1756
          %s1758 = sand.u32 %s367, 1
          %s1759 = smul.addr %s1758, 8
          %s1760 = scalar_lea.vmem [#allocation28], %s1759
          %1761 = dma.done %s1757, 128
        $region148: #{tpu_custom_call.1} parent=143 // pred_fallthru
          _
      $region144: #{tpu_custom_call.1} parent=5 // pred_fallthru
        _
    $region6: #{tpu_custom_call.1} parent=1 // loop_footer
      %s39 = sadd.s32 1, %s35
    $region7: #{tpu_custom_call.1} parent=1 // loop_footer_branch
      %34 = sbr.rel target = $region3
    $region8: #{tpu_custom_call.1} parent=1 // loop_exit
      _
    %1762 = vsyncpa [#allocation6], 1
    %s1763 = scalar_lea.sflag [#allocation6], 1
    %1764 = vsyncpa %s1763, 1
    %1765 = vsyncpa [#allocation9], 1
    %s1766 = scalar_lea.sflag [#allocation9], 1
    %1767 = vsyncpa %s1766, 1
    %1768 = vsyncpa [#allocation12], 1
    %1769 = vsyncpa [#allocation15], 1
    %1770 = vsyncpa [#allocation18], 1
    %1771 = vsyncpa [#allocation21], 1
    %1772 = vsyncpa [#allocation24], 1
    %1773 = vsyncpa [#allocation27], 1
    %1774 = vsyncpa [#allocation7], 1
    %s1775 = scalar_lea.sflag [#allocation7], 1
    %1776 = vsyncpa %s1775, 1

</llo_original>
